<compile_context>
chip_gen: v6e
topology: v6e:2x2x1
jax: 0.10.0
libtpu: 0.0.40
codegen_flags: <defaults>
</compile_context>

<pallas_src>
import functools
import math

import jax
import jax.numpy as jnp
from jax.experimental import pallas as pl
from jax.experimental.pallas import tpu as pltpu

LN_EPS = 1e-5  # PyTorch LayerNorm / TransformerEncoderLayer default


# ----------------------------- in-kernel math ------------------------------ #
def _layernorm(v, g, b):
    mu = jnp.mean(v, axis=-1, keepdims=True)
    var = jnp.mean(jnp.square(v - mu), axis=-1, keepdims=True)
    return (v - mu) * jax.lax.rsqrt(var + LN_EPS) * g + b


def _gelu(x):
    # tanh approximation of the exact (erf) GELU used by F.gelu; deviation
    # ~1e-3 (inside the test tolerance) and tanh runs on the EUP.
    c = math.sqrt(2.0 / math.pi)
    return 0.5 * x * (1.0 + jnp.tanh(c * (x + 0.044715 * x * x * x)))


# --------------------- kernel 1: embed + L encoder layers ------------------- #
def transformer_layers_kernel(x_ref, pos_ref, ng_ref, nb_ref,
                              wqkv_ref, bqkv_ref, wo_ref, bo_ref,
                              ln1g_ref, ln1b_ref, w1_ref, b1_ref,
                              w2_ref, b2_ref, ln2g_ref, ln2b_ref,
                              h_out_ref, h_scr, ctx_scr, *, nhead, head_dim):
    layer = pl.program_id(1)
    n_layers = pl.num_programs(1)
    Bt, S, H = h_scr.shape
    M = Bt * S

    # First layer step of this batch block: positional embed + input LayerNorm.
    @pl.when(layer == 0)
    def _():
        h_scr[...] = _layernorm(x_ref[...] + pos_ref[...],
                                ng_ref[...], nb_ref[...])

    h3 = h_scr[...]                                   # (Bt, S, H) f32, VMEM-resident
    hflat = h3.reshape(M, H)

    # ---- fused QKV projection: one lane-dense (M,H) x (H,3H) MXU matmul -----
    qkv = jnp.dot(hflat.astype(jnp.bfloat16), wqkv_ref[...],
                  preferred_element_type=jnp.float32) + bqkv_ref[...]
    qkv3 = qkv.reshape(Bt, S, 3 * H)

    # ---- per-head attention (scores/softmax/ctx are inherently per-head) ----
    scale = 1.0 / math.sqrt(head_dim)
    for hd in range(nhead):
        lo = hd * head_dim
        q_h = (qkv3[:, :, lo:lo + head_dim] * scale).astype(jnp.bfloat16)
        k_h = qkv3[:, :, H + lo:H + lo + head_dim].astype(jnp.bfloat16)
        v_h = qkv3[:, :, 2 * H + lo:2 * H + lo + head_dim].astype(jnp.bfloat16)
        s = jnp.einsum("bqd,bkd->bqk", q_h, k_h,
                       preferred_element_type=jnp.float32)
        s = s - jnp.max(s, axis=-1, keepdims=True)
        p = jnp.exp(s)
        p = p * pl.reciprocal(jnp.sum(p, axis=-1, keepdims=True), approx=True)
        # concat along lanes via disjoint slice stores -> (Bt, S, H) ctx
        ctx_scr[:, :, lo:lo + head_dim] = jnp.einsum(
            "bqk,bkd->bqd", p.astype(jnp.bfloat16), v_h,
            preferred_element_type=jnp.float32)

    # ---- single (M,H) x (H,H) out-projection: head reduction stays on MXU ---
    attn = jnp.dot(ctx_scr[...].reshape(M, H).astype(jnp.bfloat16), wo_ref[...],
                   preferred_element_type=jnp.float32) + bo_ref[...]

    # ---- post-norm residual 1 ------------------------------------------------
    x1 = _layernorm(hflat + attn, ln1g_ref[...], ln1b_ref[...])

    # ---- feed-forward (dropout is identity in eval) --------------------------
    f = jnp.dot(x1.astype(jnp.bfloat16), w1_ref[...],
                preferred_element_type=jnp.float32) + b1_ref[...]
    f = _gelu(f)
    f = jnp.dot(f.astype(jnp.bfloat16), w2_ref[...],
                preferred_element_type=jnp.float32) + b2_ref[...]

    # ---- post-norm residual 2: carry to the next layer grid step -------------
    h_new = _layernorm(x1 + f, ln2g_ref[...], ln2b_ref[...])
    h_scr[...] = h_new.reshape(Bt, S, H)

    @pl.when(layer == n_layers - 1)
    def _():
        h_out_ref[...] = h_new.reshape(Bt, S, H)


# --------------------- kernel 2: vocab projection (tiled) ------------------- #
def out_proj_kernel(h_ref, w_ref, b_ref, o_ref):
    Bt, S, H = h_ref.shape
    o = jnp.dot(h_ref[...].reshape(Bt * S, H).astype(jnp.bfloat16), w_ref[...],
                preferred_element_type=jnp.float32) + b_ref[...]
    o_ref[...] = o.reshape(Bt, S, o.shape[-1])


# --------------------------- host-side weight packing ----------------------- #
def _pack_layer_stacks(params):
    layers = params["layers"]

    def stack(key, dtype=jnp.float32):
        return jnp.stack([lp[key] for lp in layers]).astype(dtype)

    return dict(
        wqkv=stack("wqkv", jnp.bfloat16), bqkv=stack("bqkv"),
        wo=stack("wo", jnp.bfloat16), bo=stack("bo"),
        ln1g=stack("ln1_g"), ln1b=stack("ln1_b"),
        w1=stack("w1", jnp.bfloat16), b1=stack("b1"),
        w2=stack("w2", jnp.bfloat16), b2=stack("b2"),
        ln2g=stack("ln2_g"), ln2b=stack("ln2_b"),
    )


# ------------------------------ tiling helpers ------------------------------ #
def _pick_batch_tile(B, max_rows=8):
    # Largest divisor of B that keeps the batch grid extent >= 2 (v7x megacore),
    # capped at max_rows rows per step.
    if B < 2:
        return max(B, 1)
    cap = min(max_rows, B // 2)
    for bt in range(cap, 0, -1):
        if B % bt == 0:
            return bt
    return 1


def _pick_lane_tile(total, max_tile=2048):
    # `total` is a multiple of 128; largest multiple-of-128 divisor <= max_tile.
    best, t = 128, 128
    while t <= min(total, max_tile):
        if total % t == 0:
            best = t
        t += 128
    return best


def _block_bytes(shape, dtype):
    return math.prod(d for d in shape if d is not None) * jnp.dtype(dtype).itemsize


# ------------------------------ pallas wrapper ------------------------------ #
def transformer_image_decoder(x, params, nhead):
    """x: [B, S, H] float32  ->  [S, B, vocab] float32 (matches PyTorch)."""
    B, S, H = x.shape
    assert H % nhead == 0
    dh = H // nhead
    L = len(params["layers"])
    V = params["out_w"].shape[1]
    Vp = ((V + 127) // 128) * 128                 # lane-dense padded vocab

    Bt = _pick_batch_tile(B)
    nb = B // Bt

    pos = params["length_emb"][:S]                # embedding(arange(S)) -> (S, H)
    st = _pack_layer_stacks(params)               # (pre-pack once in production)

    layer_operands = (st["wqkv"], st["bqkv"], st["wo"], st["bo"],
                      st["ln1g"], st["ln1b"], st["w1"], st["b1"],
                      st["w2"], st["b2"], st["ln2g"], st["ln2b"])

    def const_spec(a):
        nd = a.ndim
        return pl.BlockSpec(a.shape, lambda b, l, nd=nd: (0,) * nd)

    def layer_spec(a):
        nd = a.ndim
        return pl.BlockSpec((None,) + a.shape[1:],
                            lambda b, l, nd=nd: (l,) + (0,) * (nd - 1))

    in_specs = ([pl.BlockSpec((Bt, S, H), lambda b, l: (b, 0, 0))]
                + [const_spec(a) for a in (pos, params["norm_g"], params["norm_b"])]
                + [layer_spec(a) for a in layer_operands])

    # VMEM budget: double-buffered input/output blocks + resident scratch.
    dbl = (_block_bytes((Bt, S, H), jnp.float32)           # x block
           + _block_bytes(pos.shape, jnp.float32)
           + _block_bytes(params["norm_g"].shape, jnp.float32)
           + _block_bytes(params["norm_b"].shape, jnp.float32)
           + sum(_block_bytes(a.shape[1:], a.dtype) for a in layer_operands)
           + _block_bytes((Bt, S, H), jnp.float32))        # hidden out block
    scratch = 2 * _block_bytes((Bt, S, H), jnp.float32)
    vmem_main = int(min(100 * 2**20, max(32 * 2**20, 2 * (2 * dbl + scratch))))

    hidden = pl.pallas_call(
        functools.partial(transformer_layers_kernel, nhead=nhead, head_dim=dh),
        out_shape=jax.ShapeDtypeStruct((B, S, H), jnp.float32),
        grid=(nb, L),
        in_specs=in_specs,
        out_specs=pl.BlockSpec((Bt, S, H), lambda b, l: (b, 0, 0)),
        scratch_shapes=[pltpu.VMEM((Bt, S, H), jnp.float32),   # layer-carried act
                        pltpu.VMEM((Bt, S, H), jnp.float32)],  # attention ctx
        compiler_params=pltpu.CompilerParams(
            dimension_semantics=("parallel", "arbitrary"),
            vmem_limit_bytes=vmem_main),
    )(x, pos, params["norm_g"], params["norm_b"], *layer_operands)

    # ---- vocab projection: separate call so out_w / output are not resident
    # ---- across the layer loop; vocab tiled lane-dense.
    out_w = jnp.zeros((H, Vp), jnp.float32).at[:, :V].set(params["out_w"])
    out_w = out_w.astype(jnp.bfloat16)
    out_b = jnp.zeros((1, Vp), jnp.float32).at[:, :V].set(params["out_b"])

    Vt = _pick_lane_tile(Vp)
    nv = Vp // Vt

    vmem_proj = 2 * (_block_bytes((Bt, S, H), jnp.float32)
                     + _block_bytes((H, Vt), jnp.bfloat16)
                     + _block_bytes((1, Vt), jnp.float32)
                     + _block_bytes((Bt, S, Vt), jnp.float32))
    vmem_proj = int(min(100 * 2**20, max(32 * 2**20, 2 * vmem_proj)))

    out = pl.pallas_call(
        out_proj_kernel,
        out_shape=jax.ShapeDtypeStruct((B, S, Vp), jnp.float32),
        grid=(nb, nv),
        in_specs=[pl.BlockSpec((Bt, S, H), lambda b, v: (b, 0, 0)),
                  pl.BlockSpec((H, Vt), lambda b, v: (0, v)),
                  pl.BlockSpec((1, Vt), lambda b, v: (0, v))],
        out_specs=pl.BlockSpec((Bt, S, Vt), lambda b, v: (b, 0, v)),
        compiler_params=pltpu.CompilerParams(
            dimension_semantics=("parallel", "parallel"),
            vmem_limit_bytes=vmem_proj),
    )(hidden, out_w, out_b)

    return jnp.transpose(out[:, :, :V], (1, 0, 2))   # (S, B, V)


# ----------------------------- parameter init ------------------------------ #
def init_params(key, hidden, nhead, ffdim, vocab, tr_layers, max_len=100):
    def nrm(k, shape, scale):
        return (scale * jax.random.normal(k, shape)).astype(jnp.float32)

    keys = iter(jax.random.split(key, 8 + 12 * tr_layers))
    params = {
        "length_emb": nrm(next(keys), (max_len, hidden), 0.05),
        "norm_g": jnp.ones((1, hidden), jnp.float32),
        "norm_b": jnp.zeros((1, hidden), jnp.float32),
        "out_w": nrm(next(keys), (hidden, vocab), 0.05),
        "out_b": nrm(next(keys), (1, vocab), 0.02),
        "layers": [],
    }
    for _ in range(tr_layers):
        params["layers"].append({
            "wqkv": nrm(next(keys), (hidden, 3 * hidden), 0.05),
            "bqkv": nrm(next(keys), (1, 3 * hidden), 0.02),
            "wo":   nrm(next(keys), (hidden, hidden), 0.05),
            "bo":   nrm(next(keys), (1, hidden), 0.02),
            "ln1_g": jnp.ones((1, hidden), jnp.float32),
            "ln1_b": jnp.zeros((1, hidden), jnp.float32),
            "w1":   nrm(next(keys), (hidden, ffdim), 0.05),
            "b1":   nrm(next(keys), (1, ffdim), 0.02),
            "w2":   nrm(next(keys), (ffdim, hidden), 0.05),
            "b2":   nrm(next(keys), (1, hidden), 0.02),
            "ln2_g": jnp.ones((1, hidden), jnp.float32),
            "ln2_b": jnp.zeros((1, hidden), jnp.float32),
        })
    return params


# ----------------------------- pure-JAX reference --------------------------- #
def _ref_forward(x, params, nhead):
    HI = jax.lax.Precision.HIGHEST

    def ln(v, g, b):
        mu = jnp.mean(v, axis=-1, keepdims=True)
        var = jnp.mean((v - mu) ** 2, axis=-1, keepdims=True)
        return (v - mu) / jnp.sqrt(var + LN_EPS) * g + b

    B, S, H = x.shape
    dh = H // nhead
    h = ln(x + params["length_emb"][:S][None], params["norm_g"], params["norm_b"])
    for lp in params["layers"]:
        qkv = jnp.einsum("bsh,hd->bsd", h, lp["wqkv"], precision=HI) + lp["bqkv"]
        q, k, v = jnp.split(qkv, 3, axis=-1)
        q = q.reshape(B, S, nhead, dh).transpose(0, 2, 1, 3)
        k = k.reshape(B, S, nhead, dh).transpose(0, 2, 1, 3)
        v = v.reshape(B, S, nhead, dh).transpose(0, 2, 1, 3)
        s = jnp.einsum("bhqd,bhkd->bhqk", q, k, precision=HI) / math.sqrt(dh)
        p = jax.nn.softmax(s, axis=-1)
        ctx = jnp.einsum("bhqk,bhkd->bhqd", p, v, precision=HI)
        ctx = ctx.transpose(0, 2, 1, 3).reshape(B, S, H)
        attn = jnp.einsum("bsh,hd->bsd", ctx, lp["wo"], precision=HI) + lp["bo"]
        x1 = ln(h + attn, lp["ln1_g"], lp["ln1_b"])
        f = jnp.einsum("bsh,hf->bsf", x1, lp["w1"], precision=HI) + lp["b1"]
        f = jax.nn.gelu(f, approximate=False)
        f = jnp.einsum("bsf,fh->bsh", f, lp["w2"], precision=HI) + lp["b2"]
        h = ln(x1 + f, lp["ln2_g"], lp["ln2_b"])
    out = jnp.einsum("bsh,hv->bsv", h, params["out_w"], precision=HI) + params["out_b"]
    return jnp.transpose(out, (1, 0, 2))


# ---------------------------------- main ------------------------------------ #
if __name__ == "__main__":
    B, S, HIDDEN, NHEAD, FFDIM, VOCAB, LAYERS = 2, 8, 32, 4, 64, 48, 2

    key = jax.random.PRNGKey(0)
    k_x, k_p = jax.random.split(key)
    x = jax.random.normal(k_x, (B, S, HIDDEN), dtype=jnp.float32)
    params = init_params(k_p, HIDDEN, NHEAD, FFDIM, VOCAB, LAYERS)

    fwd = jax.jit(lambda xx, pp: transformer_image_decoder(xx, pp, NHEAD))
    out = jax.block_until_ready(fwd(x, params))
    assert out.shape == (S, B, VOCAB), out.shape

    ref = jax.block_until_ready(_ref_forward(x, params, NHEAD))
    max_err = float(jnp.max(jnp.abs(out - ref)))
    # bf16 matmuls + tanh-GELU + approx reciprocal vs f32/exact reference.
    assert jnp.allclose(out, ref, atol=2e-2, rtol=2e-2), max_err

    print("KERNEL_OK")
</pallas_src>

<mosaic_0001>
module attributes {stable_mosaic.version = 11 : i64} {
  func.func @out_proj_kernel(%arg0: i32, %arg1: i32, %arg2: memref<1x8x32xf32, #tpu.memory_space<vmem>>, %arg3: memref<32x128xbf16, #tpu.memory_space<vmem>>, %arg4: memref<1x128xf32, #tpu.memory_space<vmem>>, %arg5: memref<1x8x128xf32, #tpu.memory_space<vmem>>) attributes {dimension_semantics = [#tpu.dimension_semantics<parallel>, #tpu.dimension_semantics<parallel>], iteration_bounds = array<i64: 2, 1>, scalar_prefetch = 0 : i64, scratch_operands = 0 : i64, tpu.core_type = #tpu.core_type<tc>, window_params = [{transform_indices = @transform_0, window_bounds = array<i64: 1, 8, 32>}, {transform_indices = @transform_1, window_bounds = array<i64: 32, 128>}, {transform_indices = @transform_2, window_bounds = array<i64: 1, 128>}, {transform_indices = @transform_3, window_bounds = array<i64: 1, 8, 128>}]} {
    %c0 = arith.constant 0 : index
    %c0_0 = arith.constant 0 : index
    %c0_1 = arith.constant 0 : index
    %0 = vector.load %arg2[%c0, %c0_0, %c0_1] : memref<1x8x32xf32, #tpu.memory_space<vmem>>, vector<1x8x32xf32>
    %1 = vector.shape_cast %0 : vector<1x8x32xf32> to vector<8x32xf32>
    %2 = arith.truncf %1 : vector<8x32xf32> to vector<8x32xbf16>
    %c0_2 = arith.constant 0 : index
    %c0_3 = arith.constant 0 : index
    %3 = vector.load %arg3[%c0_2, %c0_3] : memref<32x128xbf16, #tpu.memory_space<vmem>>, vector<32x128xbf16>
    %cst = arith.constant dense<0.000000e+00> : vector<8x128xf32>
    %4 = tpu.matmul %2, %3, %cst {dimension_numbers = #tpu.dot_dimension_numbers<[1], [0], [0], [1], [0, 0, 1, 1], [], []>} : vector<8x32xbf16>, vector<32x128xbf16>, vector<8x128xf32> -> vector<8x128xf32>
    %c0_4 = arith.constant 0 : index
    %c0_5 = arith.constant 0 : index
    %5 = vector.load %arg4[%c0_4, %c0_5] : memref<1x128xf32, #tpu.memory_space<vmem>>, vector<1x128xf32>
    %6 = vector.broadcast %5 : vector<1x128xf32> to vector<8x128xf32>
    %7 = arith.addf %4, %6 : vector<8x128xf32>
    %8 = vector.shape_cast %7 : vector<8x128xf32> to vector<1x8x128xf32>
    %c0_6 = arith.constant 0 : index
    %c0_7 = arith.constant 0 : index
    %c0_8 = arith.constant 0 : index
    %9 = vector.load %arg5[%c0_6, %c0_7, %c0_8] : memref<1x8x128xf32, #tpu.memory_space<vmem>>, vector<1x8x128xf32>
    tpu.vector_store %arg5[%c0_6, %c0_7, %c0_8], %8 {strides = array<i32>} : memref<1x8x128xf32, #tpu.memory_space<vmem>>, vector<1x8x128xf32>,
    return
  }
  func.func @transform_0(%arg0: i32, %arg1: i32) -> (i32, i32, i32) {
    %c0_i32 = arith.constant 0 : i32
    %c0_i32_0 = arith.constant 0 : i32
    %c0_i32_1 = arith.constant 0 : i32
    return %arg0, %c0_i32, %c0_i32_0 : i32, i32, i32
  }
  func.func @transform_1(%arg0: i32, %arg1: i32) -> (i32, i32) {
    %c0_i32 = arith.constant 0 : i32
    %c0_i32_0 = arith.constant 0 : i32
    return %c0_i32, %arg1 : i32, i32
  }
  func.func @transform_2(%arg0: i32, %arg1: i32) -> (i32, i32) {
    %c0_i32 = arith.constant 0 : i32
    %c0_i32_0 = arith.constant 0 : i32
    return %c0_i32, %arg1 : i32, i32
  }
  func.func @transform_3(%arg0: i32, %arg1: i32) -> (i32, i32, i32) {
    %c0_i32 = arith.constant 0 : i32
    %c0_i32_0 = arith.constant 0 : i32
    return %arg0, %c0_i32, %arg1 : i32, i32, i32
  }
}

module attributes {stable_mosaic.version = 11 : i64} {
  func.func @transformer_layers_kernel(%arg0: i32, %arg1: i32, %arg2: memref<1x8x32xf32, #tpu.memory_space<vmem>>, %arg3: memref<8x32xf32, #tpu.memory_space<vmem>>, %arg4: memref<1x32xf32, #tpu.memory_space<vmem>>, %arg5: memref<1x32xf32, #tpu.memory_space<vmem>>, %arg6: memref<1x32x96xbf16, #tpu.memory_space<vmem>>, %arg7: memref<1x1x96xf32, #tpu.memory_space<vmem>>, %arg8: memref<1x32x32xbf16, #tpu.memory_space<vmem>>, %arg9: memref<1x1x32xf32, #tpu.memory_space<vmem>>, %arg10: memref<1x1x32xf32, #tpu.memory_space<vmem>>, %arg11: memref<1x1x32xf32, #tpu.memory_space<vmem>>, %arg12: memref<1x32x64xbf16, #tpu.memory_space<vmem>>, %arg13: memref<1x1x64xf32, #tpu.memory_space<vmem>>, %arg14: memref<1x64x32xbf16, #tpu.memory_space<vmem>>, %arg15: memref<1x1x32xf32, #tpu.memory_space<vmem>>, %arg16: memref<1x1x32xf32, #tpu.memory_space<vmem>>, %arg17: memref<1x1x32xf32, #tpu.memory_space<vmem>>, %arg18: memref<1x8x32xf32, #tpu.memory_space<vmem>>, %arg19: memref<1x8x32xf32, #tpu.memory_space<vmem>>, %arg20: memref<1x8x32xf32, #tpu.memory_space<vmem>>) attributes {dimension_semantics = [#tpu.dimension_semantics<parallel>, #tpu.dimension_semantics<arbitrary>], iteration_bounds = array<i64: 2, 2>, scalar_prefetch = 0 : i64, scratch_operands = 2 : i64, tpu.core_type = #tpu.core_type<tc>, window_params = [{transform_indices = @transform_0, window_bounds = array<i64: 1, 8, 32>}, {pipeline_mode = #tpu.pipeline_mode<synchronous>, transform_indices = @transform_1, window_bounds = array<i64: 8, 32>}, {pipeline_mode = #tpu.pipeline_mode<synchronous>, transform_indices = @transform_2, window_bounds = array<i64: 1, 32>}, {pipeline_mode = #tpu.pipeline_mode<synchronous>, transform_indices = @transform_3, window_bounds = array<i64: 1, 32>}, {transform_indices = @transform_4, window_bounds = array<i64: 1, 32, 96>}, {transform_indices = @transform_5, window_bounds = array<i64: 1, 1, 96>}, {transform_indices = @transform_6, window_bounds = array<i64: 1, 32, 32>}, {transform_indices = @transform_7, window_bounds = array<i64: 1, 1, 32>}, {transform_indices = @transform_8, window_bounds = array<i64: 1, 1, 32>}, {transform_indices = @transform_9, window_bounds = array<i64: 1, 1, 32>}, {transform_indices = @transform_10, window_bounds = array<i64: 1, 32, 64>}, {transform_indices = @transform_11, window_bounds = array<i64: 1, 1, 64>}, {transform_indices = @transform_12, window_bounds = array<i64: 1, 64, 32>}, {transform_indices = @transform_13, window_bounds = array<i64: 1, 1, 32>}, {transform_indices = @transform_14, window_bounds = array<i64: 1, 1, 32>}, {transform_indices = @transform_15, window_bounds = array<i64: 1, 1, 32>}, {transform_indices = @transform_16, window_bounds = array<i64: 1, 8, 32>}]} {
    %c0_i32 = arith.constant 0 : i32
    %0 = arith.cmpi eq, %arg1, %c0_i32 : i32
    %1 = arith.extui %0 : i1 to i32
    %c0_i32_0 = arith.constant 0 : i32
    %2 = arith.cmpi ne, %1, %c0_i32_0 : i32
    scf.if %2 {
      %c0_92 = arith.constant 0 : index
      %c0_93 = arith.constant 0 : index
      %c0_94 = arith.constant 0 : index
      %200 = vector.load %arg2[%c0_92, %c0_93, %c0_94] : memref<1x8x32xf32, #tpu.memory_space<vmem>>, vector<1x8x32xf32>
      %c0_95 = arith.constant 0 : index
      %c0_96 = arith.constant 0 : index
      %201 = vector.load %arg3[%c0_95, %c0_96] : memref<8x32xf32, #tpu.memory_space<vmem>>, vector<8x32xf32>
      %202 = vector.shape_cast %201 : vector<8x32xf32> to vector<1x8x32xf32>
      %203 = arith.addf %200, %202 : vector<1x8x32xf32>
      %c0_97 = arith.constant 0 : index
      %c0_98 = arith.constant 0 : index
      %204 = vector.load %arg4[%c0_97, %c0_98] : memref<1x32xf32, #tpu.memory_space<vmem>>, vector<1x32xf32>
      %c0_99 = arith.constant 0 : index
      %c0_100 = arith.constant 0 : index
      %205 = vector.load %arg5[%c0_99, %c0_100] : memref<1x32xf32, #tpu.memory_space<vmem>>, vector<1x32xf32>
      %cst_101 = arith.constant dense<0.000000e+00> : vector<1x8xf32>
      %206 = vector.multi_reduction <add>, %203, %cst_101 [2] : vector<1x8x32xf32> to vector<1x8xf32>
      %207 = vector.shape_cast %206 : vector<1x8xf32> to vector<1x8x1xf32>
      %cst_102 = arith.constant 3.200000e+01 : f32
      %208 = vector.broadcast %cst_102 : f32 to vector<1x8x1xf32>
      %209 = arith.divf %207, %208 : vector<1x8x1xf32>
      %210 = vector.broadcast %209 : vector<1x8x1xf32> to vector<1x8x32xf32>
      %211 = arith.subf %203, %210 : vector<1x8x32xf32>
      %212 = arith.mulf %211, %211 : vector<1x8x32xf32>
      %cst_103 = arith.constant dense<0.000000e+00> : vector<1x8xf32>
      %213 = vector.multi_reduction <add>, %212, %cst_103 [2] : vector<1x8x32xf32> to vector<1x8xf32>
      %214 = vector.shape_cast %213 : vector<1x8xf32> to vector<1x8x1xf32>
      %cst_104 = arith.constant 3.200000e+01 : f32
      %215 = vector.broadcast %cst_104 : f32 to vector<1x8x1xf32>
      %216 = arith.divf %214, %215 : vector<1x8x1xf32>
      %217 = vector.broadcast %209 : vector<1x8x1xf32> to vector<1x8x32xf32>
      %218 = arith.subf %203, %217 : vector<1x8x32xf32>
      %cst_105 = arith.constant 9.99999974E-6 : f32
      %219 = vector.broadcast %cst_105 : f32 to vector<1x8x1xf32>
      %220 = arith.addf %216, %219 : vector<1x8x1xf32>
      %221 = math.rsqrt %220 : vector<1x8x1xf32>
      %222 = vector.broadcast %221 : vector<1x8x1xf32> to vector<1x8x32xf32>
      %223 = arith.mulf %218, %222 : vector<1x8x32xf32>
      %224 = vector.shape_cast %204 : vector<1x32xf32> to vector<1x1x32xf32>
      %225 = vector.broadcast %224 : vector<1x1x32xf32> to vector<1x8x32xf32>
      %226 = arith.mulf %223, %225 : vector<1x8x32xf32>
      %227 = vector.shape_cast %205 : vector<1x32xf32> to vector<1x1x32xf32>
      %228 = vector.broadcast %227 : vector<1x1x32xf32> to vector<1x8x32xf32>
      %229 = arith.addf %226, %228 : vector<1x8x32xf32>
      %c0_106 = arith.constant 0 : index
      %c0_107 = arith.constant 0 : index
      %c0_108 = arith.constant 0 : index
      %230 = vector.load %arg19[%c0_106, %c0_107, %c0_108] : memref<1x8x32xf32, #tpu.memory_space<vmem>>, vector<1x8x32xf32>
      tpu.vector_store %arg19[%c0_106, %c0_107, %c0_108], %229 {strides = array<i32>} : memref<1x8x32xf32, #tpu.memory_space<vmem>>, vector<1x8x32xf32>,
    } else {
    }
    %c0 = arith.constant 0 : index
    %c0_1 = arith.constant 0 : index
    %c0_2 = arith.constant 0 : index
    %3 = vector.load %arg19[%c0, %c0_1, %c0_2] : memref<1x8x32xf32, #tpu.memory_space<vmem>>, vector<1x8x32xf32>
    %4 = vector.shape_cast %3 : vector<1x8x32xf32> to vector<8x32xf32>
    %5 = arith.truncf %4 : vector<8x32xf32> to vector<8x32xbf16>
    %c0_3 = arith.constant 0 : index
    %c0_4 = arith.constant 0 : index
    %c0_5 = arith.constant 0 : index
    %6 = vector.load %arg6[%c0_3, %c0_4, %c0_5] : memref<1x32x96xbf16, #tpu.memory_space<vmem>>, vector<1x32x96xbf16>
    %7 = vector.shape_cast %6 : vector<1x32x96xbf16> to vector<32x96xbf16>
    %cst = arith.constant dense<0.000000e+00> : vector<8x96xf32>
    %8 = tpu.matmul %5, %7, %cst {dimension_numbers = #tpu.dot_dimension_numbers<[1], [0], [0], [1], [0, 0, 1, 1], [], []>} : vector<8x32xbf16>, vector<32x96xbf16>, vector<8x96xf32> -> vector<8x96xf32>
    %c0_6 = arith.constant 0 : index
    %c0_7 = arith.constant 0 : index
    %c0_8 = arith.constant 0 : index
    %9 = vector.load %arg7[%c0_6, %c0_7, %c0_8] : memref<1x1x96xf32, #tpu.memory_space<vmem>>, vector<1x1x96xf32>
    %10 = vector.shape_cast %9 : vector<1x1x96xf32> to vector<1x96xf32>
    %11 = vector.broadcast %10 : vector<1x96xf32> to vector<8x96xf32>
    %12 = arith.addf %8, %11 : vector<8x96xf32>
    %13 = vector.shape_cast %12 : vector<8x96xf32> to vector<1x8x96xf32>
    %14 = vector.extract_strided_slice %13 {offsets = [0, 0, 0], sizes = [1, 8, 8], strides = [1, 1, 1]} : vector<1x8x96xf32> to vector<1x8x8xf32>
    %cst_9 = arith.constant 0.353553385 : f32
    %15 = vector.broadcast %cst_9 : f32 to vector<1x8x8xf32>
    %16 = arith.mulf %14, %15 : vector<1x8x8xf32>
    %17 = arith.truncf %16 : vector<1x8x8xf32> to vector<1x8x8xbf16>
    %18 = vector.extract_strided_slice %13 {offsets = [0, 0, 32], sizes = [1, 8, 8], strides = [1, 1, 1]} : vector<1x8x96xf32> to vector<1x8x8xf32>
    %19 = arith.truncf %18 : vector<1x8x8xf32> to vector<1x8x8xbf16>
    %20 = vector.extract_strided_slice %13 {offsets = [0, 0, 64], sizes = [1, 8, 8], strides = [1, 1, 1]} : vector<1x8x96xf32> to vector<1x8x8xf32>
    %21 = arith.truncf %20 : vector<1x8x8xf32> to vector<1x8x8xbf16>
    "tpu.trace_start"() <{level = 10 : i32, message = "bqd,bkd->bqk"}> : () -> ()
    %cst_10 = arith.constant dense<0.000000e+00> : vector<1x8x8xf32>
    %22 = tpu.matmul %17, %19, %cst_10 {dimension_numbers = #tpu.dot_dimension_numbers<[2], [2], [1], [1], [0, 0, 0, 1, 1, 1], [0], [0]>} : vector<1x8x8xbf16>, vector<1x8x8xbf16>, vector<1x8x8xf32> -> vector<1x8x8xf32>
    "tpu.trace_stop"() : () -> ()
    %cst_11 = arith.constant dense<0xFF800000> : vector<1x8xf32>
    %23 = vector.multi_reduction <maximumf>, %22, %cst_11 [2] : vector<1x8x8xf32> to vector<1x8xf32>
    %24 = vector.shape_cast %23 : vector<1x8xf32> to vector<1x8x1xf32>
    %25 = vector.broadcast %24 : vector<1x8x1xf32> to vector<1x8x8xf32>
    %26 = arith.subf %22, %25 : vector<1x8x8xf32>
    %27 = math.exp %26 : vector<1x8x8xf32>
    %cst_12 = arith.constant dense<0.000000e+00> : vector<1x8xf32>
    %28 = vector.multi_reduction <add>, %27, %cst_12 [2] : vector<1x8x8xf32> to vector<1x8xf32>
    %29 = vector.shape_cast %28 : vector<1x8xf32> to vector<1x8x1xf32>
    %30 = tpu.reciprocal %29 {approx = true} : vector<1x8x1xf32> -> vector<1x8x1xf32>
    %31 = vector.broadcast %30 : vector<1x8x1xf32> to vector<1x8x8xf32>
    %32 = arith.mulf %27, %31 : vector<1x8x8xf32>
    %33 = arith.truncf %32 : vector<1x8x8xf32> to vector<1x8x8xbf16>
    "tpu.trace_start"() <{level = 10 : i32, message = "bqk,bkd->bqd"}> : () -> ()
    %cst_13 = arith.constant dense<0.000000e+00> : vector<1x8x8xf32>
    %34 = tpu.matmul %33, %21, %cst_13 {dimension_numbers = #tpu.dot_dimension_numbers<[2], [1], [1], [2], [0, 0, 0, 1, 1, 2], [0], [0]>} : vector<1x8x8xbf16>, vector<1x8x8xbf16>, vector<1x8x8xf32> -> vector<1x8x8xf32>
    "tpu.trace_stop"() : () -> ()
    %c0_14 = arith.constant 0 : index
    %c0_15 = arith.constant 0 : index
    %c0_16 = arith.constant 0 : index
    %35 = vector.load %arg20[%c0_14, %c0_15, %c0_16] : memref<1x8x32xf32, #tpu.memory_space<vmem>>, vector<1x8x8xf32>
    tpu.vector_store %arg20[%c0_14, %c0_15, %c0_16], %34 {strides = array<i32>} : memref<1x8x32xf32, #tpu.memory_space<vmem>>, vector<1x8x8xf32>,
    %36 = vector.extract_strided_slice %13 {offsets = [0, 0, 8], sizes = [1, 8, 8], strides = [1, 1, 1]} : vector<1x8x96xf32> to vector<1x8x8xf32>
    %cst_17 = arith.constant 0.353553385 : f32
    %37 = vector.broadcast %cst_17 : f32 to vector<1x8x8xf32>
    %38 = arith.mulf %36, %37 : vector<1x8x8xf32>
    %39 = arith.truncf %38 : vector<1x8x8xf32> to vector<1x8x8xbf16>
    %40 = vector.extract_strided_slice %13 {offsets = [0, 0, 40], sizes = [1, 8, 8], strides = [1, 1, 1]} : vector<1x8x96xf32> to vector<1x8x8xf32>
    %41 = arith.truncf %40 : vector<1x8x8xf32> to vector<1x8x8xbf16>
    %42 = vector.extract_strided_slice %13 {offsets = [0, 0, 72], sizes = [1, 8, 8], strides = [1, 1, 1]} : vector<1x8x96xf32> to vector<1x8x8xf32>
    %43 = arith.truncf %42 : vector<1x8x8xf32> to vector<1x8x8xbf16>
    "tpu.trace_start"() <{level = 10 : i32, message = "bqd,bkd->bqk"}> : () -> ()
    %cst_18 = arith.constant dense<0.000000e+00> : vector<1x8x8xf32>
    %44 = tpu.matmul %39, %41, %cst_18 {dimension_numbers = #tpu.dot_dimension_numbers<[2], [2], [1], [1], [0, 0, 0, 1, 1, 1], [0], [0]>} : vector<1x8x8xbf16>, vector<1x8x8xbf16>, vector<1x8x8xf32> -> vector<1x8x8xf32>
    "tpu.trace_stop"() : () -> ()
    %cst_19 = arith.constant dense<0xFF800000> : vector<1x8xf32>
    %45 = vector.multi_reduction <maximumf>, %44, %cst_19 [2] : vector<1x8x8xf32> to vector<1x8xf32>
    %46 = vector.shape_cast %45 : vector<1x8xf32> to vector<1x8x1xf32>
    %47 = vector.broadcast %46 : vector<1x8x1xf32> to vector<1x8x8xf32>
    %48 = arith.subf %44, %47 : vector<1x8x8xf32>
    %49 = math.exp %48 : vector<1x8x8xf32>
    %cst_20 = arith.constant dense<0.000000e+00> : vector<1x8xf32>
    %50 = vector.multi_reduction <add>, %49, %cst_20 [2] : vector<1x8x8xf32> to vector<1x8xf32>
    %51 = vector.shape_cast %50 : vector<1x8xf32> to vector<1x8x1xf32>
    %52 = tpu.reciprocal %51 {approx = true} : vector<1x8x1xf32> -> vector<1x8x1xf32>
    %53 = vector.broadcast %52 : vector<1x8x1xf32> to vector<1x8x8xf32>
    %54 = arith.mulf %49, %53 : vector<1x8x8xf32>
    %55 = arith.truncf %54 : vector<1x8x8xf32> to vector<1x8x8xbf16>
    "tpu.trace_start"() <{level = 10 : i32, message = "bqk,bkd->bqd"}> : () -> ()
    %cst_21 = arith.constant dense<0.000000e+00> : vector<1x8x8xf32>
    %56 = tpu.matmul %55, %43, %cst_21 {dimension_numbers = #tpu.dot_dimension_numbers<[2], [1], [1], [2], [0, 0, 0, 1, 1, 2], [0], [0]>} : vector<1x8x8xbf16>, vector<1x8x8xbf16>, vector<1x8x8xf32> -> vector<1x8x8xf32>
    "tpu.trace_stop"() : () -> ()
    %c0_22 = arith.constant 0 : index
    %c0_23 = arith.constant 0 : index
    %c8 = arith.constant 8 : index
    %57 = vector.load %arg20[%c0_22, %c0_23, %c8] : memref<1x8x32xf32, #tpu.memory_space<vmem>>, vector<1x8x8xf32>
    tpu.vector_store %arg20[%c0_22, %c0_23, %c8], %56 {strides = array<i32>} : memref<1x8x32xf32, #tpu.memory_space<vmem>>, vector<1x8x8xf32>,
    %58 = vector.extract_strided_slice %13 {offsets = [0, 0, 16], sizes = [1, 8, 8], strides = [1, 1, 1]} : vector<1x8x96xf32> to vector<1x8x8xf32>
    %cst_24 = arith.constant 0.353553385 : f32
    %59 = vector.broadcast %cst_24 : f32 to vector<1x8x8xf32>
    %60 = arith.mulf %58, %59 : vector<1x8x8xf32>
    %61 = arith.truncf %60 : vector<1x8x8xf32> to vector<1x8x8xbf16>
    %62 = vector.extract_strided_slice %13 {offsets = [0, 0, 48], sizes = [1, 8, 8], strides = [1, 1, 1]} : vector<1x8x96xf32> to vector<1x8x8xf32>
    %63 = arith.truncf %62 : vector<1x8x8xf32> to vector<1x8x8xbf16>
    %64 = vector.extract_strided_slice %13 {offsets = [0, 0, 80], sizes = [1, 8, 8], strides = [1, 1, 1]} : vector<1x8x96xf32> to vector<1x8x8xf32>
    %65 = arith.truncf %64 : vector<1x8x8xf32> to vector<1x8x8xbf16>
    "tpu.trace_start"() <{level = 10 : i32, message = "bqd,bkd->bqk"}> : () -> ()
    %cst_25 = arith.constant dense<0.000000e+00> : vector<1x8x8xf32>
    %66 = tpu.matmul %61, %63, %cst_25 {dimension_numbers = #tpu.dot_dimension_numbers<[2], [2], [1], [1], [0, 0, 0, 1, 1, 1], [0], [0]>} : vector<1x8x8xbf16>, vector<1x8x8xbf16>, vector<1x8x8xf32> -> vector<1x8x8xf32>
    "tpu.trace_stop"() : () -> ()
    %cst_26 = arith.constant dense<0xFF800000> : vector<1x8xf32>
    %67 = vector.multi_reduction <maximumf>, %66, %cst_26 [2] : vector<1x8x8xf32> to vector<1x8xf32>
    %68 = vector.shape_cast %67 : vector<1x8xf32> to vector<1x8x1xf32>
    %69 = vector.broadcast %68 : vector<1x8x1xf32> to vector<1x8x8xf32>
    %70 = arith.subf %66, %69 : vector<1x8x8xf32>
    %71 = math.exp %70 : vector<1x8x8xf32>
    %cst_27 = arith.constant dense<0.000000e+00> : vector<1x8xf32>
    %72 = vector.multi_reduction <add>, %71, %cst_27 [2] : vector<1x8x8xf32> to vector<1x8xf32>
    %73 = vector.shape_cast %72 : vector<1x8xf32> to vector<1x8x1xf32>
    %74 = tpu.reciprocal %73 {approx = true} : vector<1x8x1xf32> -> vector<1x8x1xf32>
    %75 = vector.broadcast %74 : vector<1x8x1xf32> to vector<1x8x8xf32>
    %76 = arith.mulf %71, %75 : vector<1x8x8xf32>
    %77 = arith.truncf %76 : vector<1x8x8xf32> to vector<1x8x8xbf16>
    "tpu.trace_start"() <{level = 10 : i32, message = "bqk,bkd->bqd"}> : () -> ()
    %cst_28 = arith.constant dense<0.000000e+00> : vector<1x8x8xf32>
    %78 = tpu.matmul %77, %65, %cst_28 {dimension_numbers = #tpu.dot_dimension_numbers<[2], [1], [1], [2], [0, 0, 0, 1, 1, 2], [0], [0]>} : vector<1x8x8xbf16>, vector<1x8x8xbf16>, vector<1x8x8xf32> -> vector<1x8x8xf32>
    "tpu.trace_stop"() : () -> ()
    %c0_29 = arith.constant 0 : index
    %c0_30 = arith.constant 0 : index
    %c16 = arith.constant 16 : index
    %79 = vector.load %arg20[%c0_29, %c0_30, %c16] : memref<1x8x32xf32, #tpu.memory_space<vmem>>, vector<1x8x8xf32>
    tpu.vector_store %arg20[%c0_29, %c0_30, %c16], %78 {strides = array<i32>} : memref<1x8x32xf32, #tpu.memory_space<vmem>>, vector<1x8x8xf32>,
    %80 = vector.extract_strided_slice %13 {offsets = [0, 0, 24], sizes = [1, 8, 8], strides = [1, 1, 1]} : vector<1x8x96xf32> to vector<1x8x8xf32>
    %cst_31 = arith.constant 0.353553385 : f32
    %81 = vector.broadcast %cst_31 : f32 to vector<1x8x8xf32>
    %82 = arith.mulf %80, %81 : vector<1x8x8xf32>
    %83 = arith.truncf %82 : vector<1x8x8xf32> to vector<1x8x8xbf16>
    %84 = vector.extract_strided_slice %13 {offsets = [0, 0, 56], sizes = [1, 8, 8], strides = [1, 1, 1]} : vector<1x8x96xf32> to vector<1x8x8xf32>
    %85 = arith.truncf %84 : vector<1x8x8xf32> to vector<1x8x8xbf16>
    %86 = vector.extract_strided_slice %13 {offsets = [0, 0, 88], sizes = [1, 8, 8], strides = [1, 1, 1]} : vector<1x8x96xf32> to vector<1x8x8xf32>
    %87 = arith.truncf %86 : vector<1x8x8xf32> to vector<1x8x8xbf16>
    "tpu.trace_start"() <{level = 10 : i32, message = "bqd,bkd->bqk"}> : () -> ()
    %cst_32 = arith.constant dense<0.000000e+00> : vector<1x8x8xf32>
    %88 = tpu.matmul %83, %85, %cst_32 {dimension_numbers = #tpu.dot_dimension_numbers<[2], [2], [1], [1], [0, 0, 0, 1, 1, 1], [0], [0]>} : vector<1x8x8xbf16>, vector<1x8x8xbf16>, vector<1x8x8xf32> -> vector<1x8x8xf32>
    "tpu.trace_stop"() : () -> ()
    %cst_33 = arith.constant dense<0xFF800000> : vector<1x8xf32>
    %89 = vector.multi_reduction <maximumf>, %88, %cst_33 [2] : vector<1x8x8xf32> to vector<1x8xf32>
    %90 = vector.shape_cast %89 : vector<1x8xf32> to vector<1x8x1xf32>
    %91 = vector.broadcast %90 : vector<1x8x1xf32> to vector<1x8x8xf32>
    %92 = arith.subf %88, %91 : vector<1x8x8xf32>
    %93 = math.exp %92 : vector<1x8x8xf32>
    %cst_34 = arith.constant dense<0.000000e+00> : vector<1x8xf32>
    %94 = vector.multi_reduction <add>, %93, %cst_34 [2] : vector<1x8x8xf32> to vector<1x8xf32>
    %95 = vector.shape_cast %94 : vector<1x8xf32> to vector<1x8x1xf32>
    %96 = tpu.reciprocal %95 {approx = true} : vector<1x8x1xf32> -> vector<1x8x1xf32>
    %97 = vector.broadcast %96 : vector<1x8x1xf32> to vector<1x8x8xf32>
    %98 = arith.mulf %93, %97 : vector<1x8x8xf32>
    %99 = arith.truncf %98 : vector<1x8x8xf32> to vector<1x8x8xbf16>
    "tpu.trace_start"() <{level = 10 : i32, message = "bqk,bkd->bqd"}> : () -> ()
    %cst_35 = arith.constant dense<0.000000e+00> : vector<1x8x8xf32>
    %100 = tpu.matmul %99, %87, %cst_35 {dimension_numbers = #tpu.dot_dimension_numbers<[2], [1], [1], [2], [0, 0, 0, 1, 1, 2], [0], [0]>} : vector<1x8x8xbf16>, vector<1x8x8xbf16>, vector<1x8x8xf32> -> vector<1x8x8xf32>
    "tpu.trace_stop"() : () -> ()
    %c0_36 = arith.constant 0 : index
    %c0_37 = arith.constant 0 : index
    %c24 = arith.constant 24 : index
    %101 = vector.load %arg20[%c0_36, %c0_37, %c24] : memref<1x8x32xf32, #tpu.memory_space<vmem>>, vector<1x8x8xf32>
    tpu.vector_store %arg20[%c0_36, %c0_37, %c24], %100 {strides = array<i32>} : memref<1x8x32xf32, #tpu.memory_space<vmem>>, vector<1x8x8xf32>,
    %c0_38 = arith.constant 0 : index
    %c0_39 = arith.constant 0 : index
    %c0_40 = arith.constant 0 : index
    %102 = vector.load %arg20[%c0_38, %c0_39, %c0_40] : memref<1x8x32xf32, #tpu.memory_space<vmem>>, vector<1x8x32xf32>
    %103 = vector.shape_cast %102 : vector<1x8x32xf32> to vector<8x32xf32>
    %104 = arith.truncf %103 : vector<8x32xf32> to vector<8x32xbf16>
    %c0_41 = arith.constant 0 : index
    %c0_42 = arith.constant 0 : index
    %c0_43 = arith.constant 0 : index
    %105 = vector.load %arg8[%c0_41, %c0_42, %c0_43] : memref<1x32x32xbf16, #tpu.memory_space<vmem>>, vector<1x32x32xbf16>
    %106 = vector.shape_cast %105 : vector<1x32x32xbf16> to vector<32x32xbf16>
    %cst_44 = arith.constant dense<0.000000e+00> : vector<8x32xf32>
    %107 = tpu.matmul %104, %106, %cst_44 {dimension_numbers = #tpu.dot_dimension_numbers<[1], [0], [0], [1], [0, 0, 1, 1], [], []>} : vector<8x32xbf16>, vector<32x32xbf16>, vector<8x32xf32> -> vector<8x32xf32>
    %c0_45 = arith.constant 0 : index
    %c0_46 = arith.constant 0 : index
    %c0_47 = arith.constant 0 : index
    %108 = vector.load %arg9[%c0_45, %c0_46, %c0_47] : memref<1x1x32xf32, #tpu.memory_space<vmem>>, vector<1x1x32xf32>
    %109 = vector.shape_cast %108 : vector<1x1x32xf32> to vector<1x32xf32>
    %110 = vector.broadcast %109 : vector<1x32xf32> to vector<8x32xf32>
    %111 = arith.addf %107, %110 : vector<8x32xf32>
    %112 = arith.addf %4, %111 : vector<8x32xf32>
    %c0_48 = arith.constant 0 : index
    %c0_49 = arith.constant 0 : index
    %c0_50 = arith.constant 0 : index
    %113 = vector.load %arg10[%c0_48, %c0_49, %c0_50] : memref<1x1x32xf32, #tpu.memory_space<vmem>>, vector<1x1x32xf32>
    %114 = vector.shape_cast %113 : vector<1x1x32xf32> to vector<1x32xf32>
    %c0_51 = arith.constant 0 : index
    %c0_52 = arith.constant 0 : index
    %c0_53 = arith.constant 0 : index
    %115 = vector.load %arg11[%c0_51, %c0_52, %c0_53] : memref<1x1x32xf32, #tpu.memory_space<vmem>>, vector<1x1x32xf32>
    %116 = vector.shape_cast %115 : vector<1x1x32xf32> to vector<1x32xf32>
    %cst_54 = arith.constant dense<0.000000e+00> : vector<8xf32>
    %117 = vector.multi_reduction <add>, %112, %cst_54 [1] : vector<8x32xf32> to vector<8xf32>
    %118 = vector.shape_cast %117 : vector<8xf32> to vector<8x1xf32>
    %cst_55 = arith.constant 3.200000e+01 : f32
    %119 = vector.broadcast %cst_55 : f32 to vector<8x1xf32>
    %120 = arith.divf %118, %119 : vector<8x1xf32>
    %121 = vector.broadcast %120 : vector<8x1xf32> to vector<8x32xf32>
    %122 = arith.subf %112, %121 : vector<8x32xf32>
    %123 = arith.mulf %122, %122 : vector<8x32xf32>
    %cst_56 = arith.constant dense<0.000000e+00> : vector<8xf32>
    %124 = vector.multi_reduction <add>, %123, %cst_56 [1] : vector<8x32xf32> to vector<8xf32>
    %125 = vector.shape_cast %124 : vector<8xf32> to vector<8x1xf32>
    %cst_57 = arith.constant 3.200000e+01 : f32
    %126 = vector.broadcast %cst_57 : f32 to vector<8x1xf32>
    %127 = arith.divf %125, %126 : vector<8x1xf32>
    %128 = vector.broadcast %120 : vector<8x1xf32> to vector<8x32xf32>
    %129 = arith.subf %112, %128 : vector<8x32xf32>
    %cst_58 = arith.constant 9.99999974E-6 : f32
    %130 = vector.broadcast %cst_58 : f32 to vector<8x1xf32>
    %131 = arith.addf %127, %130 : vector<8x1xf32>
    %132 = math.rsqrt %131 : vector<8x1xf32>
    %133 = vector.broadcast %132 : vector<8x1xf32> to vector<8x32xf32>
    %134 = arith.mulf %129, %133 : vector<8x32xf32>
    %135 = vector.broadcast %114 : vector<1x32xf32> to vector<8x32xf32>
    %136 = arith.mulf %134, %135 : vector<8x32xf32>
    %137 = vector.broadcast %116 : vector<1x32xf32> to vector<8x32xf32>
    %138 = arith.addf %136, %137 : vector<8x32xf32>
    %139 = arith.truncf %138 : vector<8x32xf32> to vector<8x32xbf16>
    %c0_59 = arith.constant 0 : index
    %c0_60 = arith.constant 0 : index
    %c0_61 = arith.constant 0 : index
    %140 = vector.load %arg12[%c0_59, %c0_60, %c0_61] : memref<1x32x64xbf16, #tpu.memory_space<vmem>>, vector<1x32x64xbf16>
    %141 = vector.shape_cast %140 : vector<1x32x64xbf16> to vector<32x64xbf16>
    %cst_62 = arith.constant dense<0.000000e+00> : vector<8x64xf32>
    %142 = tpu.matmul %139, %141, %cst_62 {dimension_numbers = #tpu.dot_dimension_numbers<[1], [0], [0], [1], [0, 0, 1, 1], [], []>} : vector<8x32xbf16>, vector<32x64xbf16>, vector<8x64xf32> -> vector<8x64xf32>
    %c0_63 = arith.constant 0 : index
    %c0_64 = arith.constant 0 : index
    %c0_65 = arith.constant 0 : index
    %143 = vector.load %arg13[%c0_63, %c0_64, %c0_65] : memref<1x1x64xf32, #tpu.memory_space<vmem>>, vector<1x1x64xf32>
    %144 = vector.shape_cast %143 : vector<1x1x64xf32> to vector<1x64xf32>
    %145 = vector.broadcast %144 : vector<1x64xf32> to vector<8x64xf32>
    %146 = arith.addf %142, %145 : vector<8x64xf32>
    %cst_66 = arith.constant 5.000000e-01 : f32
    %147 = vector.broadcast %cst_66 : f32 to vector<8x64xf32>
    %148 = arith.mulf %147, %146 : vector<8x64xf32>
    %cst_67 = arith.constant 4.471500e-02 : f32
    %149 = vector.broadcast %cst_67 : f32 to vector<8x64xf32>
    %150 = arith.mulf %149, %146 : vector<8x64xf32>
    %151 = arith.mulf %150, %146 : vector<8x64xf32>
    %152 = arith.mulf %151, %146 : vector<8x64xf32>
    %153 = arith.addf %146, %152 : vector<8x64xf32>
    %cst_68 = arith.constant 0.797884583 : f32
    %154 = vector.broadcast %cst_68 : f32 to vector<8x64xf32>
    %155 = arith.mulf %154, %153 : vector<8x64xf32>
    %156 = math.tanh %155 : vector<8x64xf32>
    %cst_69 = arith.constant 1.000000e+00 : f32
    %157 = vector.broadcast %cst_69 : f32 to vector<8x64xf32>
    %158 = arith.addf %157, %156 : vector<8x64xf32>
    %159 = arith.mulf %148, %158 : vector<8x64xf32>
    %160 = arith.truncf %159 : vector<8x64xf32> to vector<8x64xbf16>
    %c0_70 = arith.constant 0 : index
    %c0_71 = arith.constant 0 : index
    %c0_72 = arith.constant 0 : index
    %161 = vector.load %arg14[%c0_70, %c0_71, %c0_72] : memref<1x64x32xbf16, #tpu.memory_space<vmem>>, vector<1x64x32xbf16>
    %162 = vector.shape_cast %161 : vector<1x64x32xbf16> to vector<64x32xbf16>
    %cst_73 = arith.constant dense<0.000000e+00> : vector<8x32xf32>
    %163 = tpu.matmul %160, %162, %cst_73 {dimension_numbers = #tpu.dot_dimension_numbers<[1], [0], [0], [1], [0, 0, 1, 1], [], []>} : vector<8x64xbf16>, vector<64x32xbf16>, vector<8x32xf32> -> vector<8x32xf32>
    %c0_74 = arith.constant 0 : index
    %c0_75 = arith.constant 0 : index
    %c0_76 = arith.constant 0 : index
    %164 = vector.load %arg15[%c0_74, %c0_75, %c0_76] : memref<1x1x32xf32, #tpu.memory_space<vmem>>, vector<1x1x32xf32>
    %165 = vector.shape_cast %164 : vector<1x1x32xf32> to vector<1x32xf32>
    %166 = vector.broadcast %165 : vector<1x32xf32> to vector<8x32xf32>
    %167 = arith.addf %163, %166 : vector<8x32xf32>
    %168 = arith.addf %138, %167 : vector<8x32xf32>
    %c0_77 = arith.constant 0 : index
    %c0_78 = arith.constant 0 : index
    %c0_79 = arith.constant 0 : index
    %169 = vector.load %arg16[%c0_77, %c0_78, %c0_79] : memref<1x1x32xf32, #tpu.memory_space<vmem>>, vector<1x1x32xf32>
    %170 = vector.shape_cast %169 : vector<1x1x32xf32> to vector<1x32xf32>
    %c0_80 = arith.constant 0 : index
    %c0_81 = arith.constant 0 : index
    %c0_82 = arith.constant 0 : index
    %171 = vector.load %arg17[%c0_80, %c0_81, %c0_82] : memref<1x1x32xf32, #tpu.memory_space<vmem>>, vector<1x1x32xf32>
    %172 = vector.shape_cast %171 : vector<1x1x32xf32> to vector<1x32xf32>
    %cst_83 = arith.constant dense<0.000000e+00> : vector<8xf32>
    %173 = vector.multi_reduction <add>, %168, %cst_83 [1] : vector<8x32xf32> to vector<8xf32>
    %174 = vector.shape_cast %173 : vector<8xf32> to vector<8x1xf32>
    %cst_84 = arith.constant 3.200000e+01 : f32
    %175 = vector.broadcast %cst_84 : f32 to vector<8x1xf32>
    %176 = arith.divf %174, %175 : vector<8x1xf32>
    %177 = vector.broadcast %176 : vector<8x1xf32> to vector<8x32xf32>
    %178 = arith.subf %168, %177 : vector<8x32xf32>
    %179 = arith.mulf %178, %178 : vector<8x32xf32>
    %cst_85 = arith.constant dense<0.000000e+00> : vector<8xf32>
    %180 = vector.multi_reduction <add>, %179, %cst_85 [1] : vector<8x32xf32> to vector<8xf32>
    %181 = vector.shape_cast %180 : vector<8xf32> to vector<8x1xf32>
    %cst_86 = arith.constant 3.200000e+01 : f32
    %182 = vector.broadcast %cst_86 : f32 to vector<8x1xf32>
    %183 = arith.divf %181, %182 : vector<8x1xf32>
    %184 = vector.broadcast %176 : vector<8x1xf32> to vector<8x32xf32>
    %185 = arith.subf %168, %184 : vector<8x32xf32>
    %cst_87 = arith.constant 9.99999974E-6 : f32
    %186 = vector.broadcast %cst_87 : f32 to vector<8x1xf32>
    %187 = arith.addf %183, %186 : vector<8x1xf32>
    %188 = math.rsqrt %187 : vector<8x1xf32>
    %189 = vector.broadcast %188 : vector<8x1xf32> to vector<8x32xf32>
    %190 = arith.mulf %185, %189 : vector<8x32xf32>
    %191 = vector.broadcast %170 : vector<1x32xf32> to vector<8x32xf32>
    %192 = arith.mulf %190, %191 : vector<8x32xf32>
    %193 = vector.broadcast %172 : vector<1x32xf32> to vector<8x32xf32>
    %194 = arith.addf %192, %193 : vector<8x32xf32>
    %195 = vector.shape_cast %194 : vector<8x32xf32> to vector<1x8x32xf32>
    %c0_88 = arith.constant 0 : index
    %c0_89 = arith.constant 0 : index
    %c0_90 = arith.constant 0 : index
    %196 = vector.load %arg19[%c0_88, %c0_89, %c0_90] : memref<1x8x32xf32, #tpu.memory_space<vmem>>, vector<1x8x32xf32>
    tpu.vector_store %arg19[%c0_88, %c0_89, %c0_90], %195 {strides = array<i32>} : memref<1x8x32xf32, #tpu.memory_space<vmem>>, vector<1x8x32xf32>,
    %c1_i32 = arith.constant 1 : i32
    %197 = arith.cmpi eq, %arg1, %c1_i32 : i32
    %198 = arith.extui %197 : i1 to i32
    %c0_i32_91 = arith.constant 0 : i32
    %199 = arith.cmpi ne, %198, %c0_i32_91 : i32
    scf.if %199 {
      %200 = vector.shape_cast %194 : vector<8x32xf32> to vector<1x8x32xf32>
      %c0_92 = arith.constant 0 : index
      %c0_93 = arith.constant 0 : index
      %c0_94 = arith.constant 0 : index
      %201 = vector.load %arg18[%c0_92, %c0_93, %c0_94] : memref<1x8x32xf32, #tpu.memory_space<vmem>>, vector<1x8x32xf32>
      tpu.vector_store %arg18[%c0_92, %c0_93, %c0_94], %200 {strides = array<i32>} : memref<1x8x32xf32, #tpu.memory_space<vmem>>, vector<1x8x32xf32>,
    } else {
    }
    return
  }
  func.func @transform_0(%arg0: i32, %arg1: i32) -> (i32, i32, i32) {
    %c0_i32 = arith.constant 0 : i32
    %c0_i32_0 = arith.constant 0 : i32
    %c0_i32_1 = arith.constant 0 : i32
    return %arg0, %c0_i32, %c0_i32_0 : i32, i32, i32
  }
  func.func @transform_1(%arg0: i32, %arg1: i32) -> (i32, i32) {
    %c0_i32 = arith.constant 0 : i32
    %c0_i32_0 = arith.constant 0 : i32
    %c0_i32_1 = arith.constant 0 : i32
    return %c0_i32, %c0_i32_0 : i32, i32
  }
  func.func @transform_2(%arg0: i32, %arg1: i32) -> (i32, i32) {
    %c0_i32 = arith.constant 0 : i32
    %c0_i32_0 = arith.constant 0 : i32
    %c0_i32_1 = arith.constant 0 : i32
    return %c0_i32, %c0_i32_0 : i32, i32
  }
  func.func @transform_3(%arg0: i32, %arg1: i32) -> (i32, i32) {
    %c0_i32 = arith.constant 0 : i32
    %c0_i32_0 = arith.constant 0 : i32
    %c0_i32_1 = arith.constant 0 : i32
    return %c0_i32, %c0_i32_0 : i32, i32
  }
  func.func @transform_4(%arg0: i32, %arg1: i32) -> (i32, i32, i32) {
    %c0_i32 = arith.constant 0 : i32
    %c0_i32_0 = arith.constant 0 : i32
    %c0_i32_1 = arith.constant 0 : i32
    return %arg1, %c0_i32, %c0_i32_0 : i32, i32, i32
  }
  func.func @transform_5(%arg0: i32, %arg1: i32) -> (i32, i32, i32) {
    %c0_i32 = arith.constant 0 : i32
    %c0_i32_0 = arith.constant 0 : i32
    %c0_i32_1 = arith.constant 0 : i32
    return %arg1, %c0_i32, %c0_i32_0 : i32, i32, i32
  }
  func.func @transform_6(%arg0: i32, %arg1: i32) -> (i32, i32, i32) {
    %c0_i32 = arith.constant 0 : i32
    %c0_i32_0 = arith.constant 0 : i32
    %c0_i32_1 = arith.constant 0 : i32
    return %arg1, %c0_i32, %c0_i32_0 : i32, i32, i32
  }
  func.func @transform_7(%arg0: i32, %arg1: i32) -> (i32, i32, i32) {
    %c0_i32 = arith.constant 0 : i32
    %c0_i32_0 = arith.constant 0 : i32
    %c0_i32_1 = arith.constant 0 : i32
    return %arg1, %c0_i32, %c0_i32_0 : i32, i32, i32
  }
  func.func @transform_8(%arg0: i32, %arg1: i32) -> (i32, i32, i32) {
    %c0_i32 = arith.constant 0 : i32
    %c0_i32_0 = arith.constant 0 : i32
    %c0_i32_1 = arith.constant 0 : i32
    return %arg1, %c0_i32, %c0_i32_0 : i32, i32, i32
  }
  func.func @transform_9(%arg0: i32, %arg1: i32) -> (i32, i32, i32) {
    %c0_i32 = arith.constant 0 : i32
    %c0_i32_0 = arith.constant 0 : i32
    %c0_i32_1 = arith.constant 0 : i32
    return %arg1, %c0_i32, %c0_i32_0 : i32, i32, i32
  }
  func.func @transform_10(%arg0: i32, %arg1: i32) -> (i32, i32, i32) {
    %c0_i32 = arith.constant 0 : i32
    %c0_i32_0 = arith.constant 0 : i32
    %c0_i32_1 = arith.constant 0 : i32
    return %arg1, %c0_i32, %c0_i32_0 : i32, i32, i32
  }
  func.func @transform_11(%arg0: i32, %arg1: i32) -> (i32, i32, i32) {
    %c0_i32 = arith.constant 0 : i32
    %c0_i32_0 = arith.constant 0 : i32
    %c0_i32_1 = arith.constant 0 : i32
    return %arg1, %c0_i32, %c0_i32_0 : i32, i32, i32
  }
  func.func @transform_12(%arg0: i32, %arg1: i32) -> (i32, i32, i32) {
    %c0_i32 = arith.constant 0 : i32
    %c0_i32_0 = arith.constant 0 : i32
    %c0_i32_1 = arith.constant 0 : i32
    return %arg1, %c0_i32, %c0_i32_0 : i32, i32, i32
  }
  func.func @transform_13(%arg0: i32, %arg1: i32) -> (i32, i32, i32) {
    %c0_i32 = arith.constant 0 : i32
    %c0_i32_0 = arith.constant 0 : i32
    %c0_i32_1 = arith.constant 0 : i32
    return %arg1, %c0_i32, %c0_i32_0 : i32, i32, i32
  }
  func.func @transform_14(%arg0: i32, %arg1: i32) -> (i32, i32, i32) {
    %c0_i32 = arith.constant 0 : i32
    %c0_i32_0 = arith.constant 0 : i32
    %c0_i32_1 = arith.constant 0 : i32
    return %arg1, %c0_i32, %c0_i32_0 : i32, i32, i32
  }
  func.func @transform_15(%arg0: i32, %arg1: i32) -> (i32, i32, i32) {
    %c0_i32 = arith.constant 0 : i32
    %c0_i32_0 = arith.constant 0 : i32
    %c0_i32_1 = arith.constant 0 : i32
    return %arg1, %c0_i32, %c0_i32_0 : i32, i32, i32
  }
  func.func @transform_16(%arg0: i32, %arg1: i32) -> (i32, i32, i32) {
    %c0_i32 = arith.constant 0 : i32
    %c0_i32_0 = arith.constant 0 : i32
    %c0_i32_1 = arith.constant 0 : i32
    return %arg0, %c0_i32, %c0_i32_0 : i32, i32, i32
  }
}

</mosaic_0001>

<llo_original>
// kernel: _lambda_.3
$region0: #{_lambda_.3}
  #allocation0 [shape = 'u32[]', space=smem, size = 0x4, offset = 0x4, fixed_abs, tag = 'smem constant byte address 0x4 - core index']
  #allocation1 [shape = 'u32[144,128]{1,0:T(1,128)}', space=vmem, size = 0x12000, scoped, tag = 'internal scratch']
  %s0 = inlined_call_operand.vmem [shape: f32[2,8,32], index: 0, kind: input, shape index: {}]
  %s1 = inlined_call_operand.vmem [shape: bf16[32,128], index: 1, kind: input, shape index: {}]
  %s2 = inlined_call_operand.vmem [shape: f32[1,128], index: 2, kind: input, shape index: {}]
  %s3 = inlined_call_operand.vmem [shape: f32[2,8,128], index: 3, kind: output, shape index: {}]
  %s4 = sld [smem:[#allocation0]]
  $region45: #{_lambda_.3} parent=0
    _
  %s6 = ssub.s32 1, %s4
  %s7 = scalar_select 0, %s6, %s4
  loop: start=0, step=1, limit=4
  $region2: #{_lambda_.3} parent=0 // loop_pre_header
    _
  $region3: #{_lambda_.3} parent=0 // loop_header
    %s9 = sphi 0, %s13
    %p10 = scmp.ge.s32.totalorder %s9, 4
    %s16 = sphi 0, %s28
    %s17 = sphi 0, %s24
    %s18 = sphi 0, %s16
    %s19 = sphi 0, %s17
    %s20 = sphi 0, %s18
    %s21 = sphi 0, %s19
    %s31 = sphi 0, %s33
    %s34 = sphi 0, %s31
    %s35 = sphi 0, %s34
    %s51 = sphi 0, %s35
    %s57 = sphi 0, %s59
    %s60 = sphi 0, %s57
    %s61 = sphi 0, %s60
    %s77 = sphi 0, %s61
    %s83 = sphi 0, %s85
    %s86 = sphi 0, %s83
    %s87 = sphi 0, %s86
    %s103 = sphi 0, %s87
    %s111 = sphi 0, %s113
    %s114 = sphi 0, %s111
    %s115 = sphi 0, %s114
    %s131 = sphi 0, %s115
  $region4: #{_lambda_.3} parent=0 // loop_header_branch
    %12 = sbr.rel (%p10) target = $region8
  $region5: #{_lambda_.3} parent=0 // loop_body
    %s14 = ssub.s32 %s9, 1
    %s15 = ssub.s32 %s9, 2
    %s22 = sadd.s32 1, %s17
    %p23 = scmp.ge.s32.totalorder %s22, 1
    %s24 = scalar_select %p23, 0, %s22
    %s25 = sadd.s32 1, %s16
    %s26 = scalar_select %p23, %s25, %s16
    %p27 = scmp.ge.s32.totalorder %s26, 2
    %s28 = scalar_select %p27, 0, %s26
    %s29 = ssub.s32 %s16, %s28
    %p30 = scmp.eq.s32.totalorder %s29, 0
    %s32 = sadd.s32 %s31, 1
    %s33 = scalar_select %p30, %s31, %s32
    %p36 = pneg %p30
    %p37 = scmp.eq.s32.totalorder %s9, 1
    %p38 = por %p36, %p37
    %p39 = scmp.ne.s32.totalorder %s31, %s34
    %p40 = scmp.eq.s32.totalorder %s9, 0
    %p41 = por %p39, %p40
    %p42 = scmp.ne.s32.totalorder %s31, %s34
    %p43 = scmp.eq.s32.totalorder %s14, 1
    %p44 = por %p42, %p43
    %p45 = scmp.ne.s32.totalorder %s34, %s35
    %p46 = scmp.eq.s32.totalorder %s14, 0
    %p47 = por %p45, %p46
    %p48 = scmp.ne.s32.totalorder %s34, %s35
    %p49 = scmp.eq.s32.totalorder %s15, 1
    %p50 = por %p48, %p49
    %p52 = scmp.ne.s32.totalorder %s35, %s51
    %p53 = scmp.eq.s32.totalorder %s15, 0
    %p54 = por %p52, %p53
    %s55 = ssub.s32 %s17, %s24
    %p56 = scmp.eq.s32.totalorder %s55, 0
    %s58 = sadd.s32 %s57, 1
    %s59 = scalar_select %p56, %s57, %s58
    %p62 = pneg %p56
    %p63 = scmp.eq.s32.totalorder %s9, 1
    %p64 = por %p62, %p63
    %p65 = scmp.ne.s32.totalorder %s57, %s60
    %p66 = scmp.eq.s32.totalorder %s9, 0
    %p67 = por %p65, %p66
    %p68 = scmp.ne.s32.totalorder %s57, %s60
    %p69 = scmp.eq.s32.totalorder %s14, 1
    %p70 = por %p68, %p69
    %p71 = scmp.ne.s32.totalorder %s60, %s61
    %p72 = scmp.eq.s32.totalorder %s14, 0
    %p73 = por %p71, %p72
    %p74 = scmp.ne.s32.totalorder %s60, %s61
    %p75 = scmp.eq.s32.totalorder %s15, 1
    %p76 = por %p74, %p75
    %p78 = scmp.ne.s32.totalorder %s61, %s77
    %p79 = scmp.eq.s32.totalorder %s15, 0
    %p80 = por %p78, %p79
    %s81 = ssub.s32 %s17, %s24
    %p82 = scmp.eq.s32.totalorder %s81, 0
    %s84 = sadd.s32 %s83, 1
    %s85 = scalar_select %p82, %s83, %s84
    %p88 = pneg %p82
    %p89 = scmp.eq.s32.totalorder %s9, 1
    %p90 = por %p88, %p89
    %p91 = scmp.ne.s32.totalorder %s83, %s86
    %p92 = scmp.eq.s32.totalorder %s9, 0
    %p93 = por %p91, %p92
    %p94 = scmp.ne.s32.totalorder %s83, %s86
    %p95 = scmp.eq.s32.totalorder %s14, 1
    %p96 = por %p94, %p95
    %p97 = scmp.ne.s32.totalorder %s86, %s87
    %p98 = scmp.eq.s32.totalorder %s14, 0
    %p99 = por %p97, %p98
    %p100 = scmp.ne.s32.totalorder %s86, %s87
    %p101 = scmp.eq.s32.totalorder %s15, 1
    %p102 = por %p100, %p101
    %p104 = scmp.ne.s32.totalorder %s87, %s103
    %p105 = scmp.eq.s32.totalorder %s15, 0
    %p106 = por %p104, %p105
    %s107 = ssub.s32 %s16, %s28
    %s108 = ssub.s32 %s17, %s24
    %s109 = sor.u32 %s107, %s108
    %p110 = scmp.eq.s32.totalorder %s109, 0
    %s112 = sadd.s32 %s111, 1
    %s113 = scalar_select %p110, %s111, %s112
    %p116 = pneg %p110
    %p117 = scmp.eq.s32.totalorder %s9, 1
    %p118 = por %p116, %p117
    %p119 = scmp.ne.s32.totalorder %s111, %s114
    %p120 = scmp.eq.s32.totalorder %s9, 0
    %p121 = por %p119, %p120
    %p122 = scmp.ne.s32.totalorder %s111, %s114
    %p123 = scmp.eq.s32.totalorder %s14, 1
    %p124 = por %p122, %p123
    %p125 = scmp.ne.s32.totalorder %s114, %s115
    %p126 = scmp.eq.s32.totalorder %s14, 0
    %p127 = por %p125, %p126
    %p128 = scmp.ne.s32.totalorder %s114, %s115
    %p129 = scmp.eq.s32.totalorder %s15, 1
    %p130 = por %p128, %p129
    %p132 = scmp.ne.s32.totalorder %s115, %s131
    %p133 = scmp.eq.s32.totalorder %s15, 0
    %p134 = por %p132, %p133
    %p135 = scmp.le.s32.totalorder 1, %s9
    %p136 = scmp.lt.s32.totalorder %s9, 3
    %p137 = pnand %p135, %p136
    %p138 = pneg %p137
    // Predicated region
    $region9: #{_lambda_.3} parent=5 // pred_check
      _
    $region10: #{_lambda_.3} parent=5 // pred_check_branch
      %140 = sbr.rel (%p137) target = $region12
    $region11: #{_lambda_.3} parent=5 // pred_region
      %s141 = ssub.s32 %s9, 1
      // Predicated region
      $region13: #{_lambda_.3} parent=11 // pred_check
        %p142 = pneg %p73
      $region14: #{_lambda_.3} parent=11 // pred_check_branch
        %144 = sbr.rel (%p142) target = $region16
      $region15: #{_lambda_.3} parent=11 // pred_region
        %p145 = scmp.lt.s32.totalorder %s19, 0
        %s146 = scalar_select %p145, %s19, 0
        %s147 = smul.addr %s146, 4
        %s148 = scalar_lea.vmem %s1, %s147
      $region16: #{_lambda_.3} parent=11 // pred_fallthru
        _
      // Predicated region
      $region17: #{_lambda_.3} parent=11 // pred_check
        %p149 = pneg %p99
      $region18: #{_lambda_.3} parent=11 // pred_check_branch
        %151 = sbr.rel (%p149) target = $region20
      $region19: #{_lambda_.3} parent=11 // pred_region
        %p152 = scmp.lt.s32.totalorder %s19, 0
        %s153 = scalar_select %p152, %s19, 0
        %s154 = scalar_lea.vmem %s2, %s153
      $region20: #{_lambda_.3} parent=11 // pred_fallthru
        _
    $region12: #{_lambda_.3} parent=5 // pred_fallthru
      _
    %p155 = scmp.lt.s32.totalorder %s9, 2
    // Predicated region
    $region21: #{_lambda_.3} parent=5 // pred_check
      %p156 = pneg %p155
    $region22: #{_lambda_.3} parent=5 // pred_check_branch
      %158 = sbr.rel (%p156) target = $region24
    $region23: #{_lambda_.3} parent=5 // pred_region
      // Predicated region
      $region25: #{_lambda_.3} parent=23 // pred_check
        %p159 = pneg %p41
      $region26: #{_lambda_.3} parent=23 // pred_check_branch
        %161 = sbr.rel (%p159) target = $region28
      $region27: #{_lambda_.3} parent=23 // pred_region
        %p162 = scmp.lt.s32.totalorder %s16, 1
        %s163 = scalar_select %p162, %s16, 1
        %s164 = smul.addr %s163, 8
        %s165 = scalar_lea.vmem %s0, %s164
      $region28: #{_lambda_.3} parent=23 // pred_fallthru
        _
    $region24: #{_lambda_.3} parent=5 // pred_fallthru
      _
    %p166 = scmp.le.s32.totalorder 1, %s9
    %p167 = scmp.lt.s32.totalorder %s9, 3
    %p168 = pnand %p166, %p167
    %p169 = pneg %p168
    // Predicated region
    $region29: #{_lambda_.3} parent=5 // pred_check
      _
    $region30: #{_lambda_.3} parent=5 // pred_check_branch
      %171 = sbr.rel (%p168) target = $region32
    $region31: #{_lambda_.3} parent=5 // pred_region
      %s172 = ssub.s32 %s9, 1
      %p173 = scmp.lt.s32.totalorder %s18, 1
      %s174 = scalar_select %p173, %s18, 1
      %s175 = smul.addr %s174, 8
      %s176 = scalar_lea.vmem %s0, %s175
      %p177 = pneg %p47
      %p178 = pneg %p44
      %p179 = scmp.lt.s32.totalorder %s19, 0
      %s180 = scalar_select %p179, %s19, 0
      %s181 = smul.addr %s180, 4
      %s182 = scalar_lea.vmem %s1, %s181
      %p183 = pneg %p73
      %p184 = pneg %p70
      %p185 = scmp.lt.s32.totalorder %s19, 0
      %s186 = scalar_select %p185, %s19, 0
      %s187 = scalar_lea.vmem %s2, %s186
      %p188 = pneg %p99
      %p189 = pneg %p96
      %p190 = pneg %p127
      %p191 = pneg %p124
      %p192 = scmp.lt.s32.totalorder %s18, 1
      %s193 = scalar_select %p192, %s18, 1
      %p194 = scmp.lt.s32.totalorder %s19, 0
      %s195 = scalar_select %p194, %s19, 0
      %s196 = sadd.s32 %s195, %s193
      %s197 = smul.addr %s196, 8
      %s198 = scalar_lea.vmem %s3, %s197
      %p199 = scmp.lt.s32.totalorder %s18, 1
      %s200 = scalar_select %p199, %s18, 1
      %s201 = smul.addr %s200, 8
      %s202 = scalar_lea.vmem %s0, %s201
      %p203 = scmp.lt.s32.totalorder %s19, 0
      %s204 = scalar_select %p203, %s19, 0
      %s205 = smul.addr %s204, 4
      %s206 = scalar_lea.vmem %s1, %s205
      %p207 = scmp.lt.s32.totalorder %s19, 0
      %s208 = scalar_select %p207, %s19, 0
      %s209 = scalar_lea.vmem %s2, %s208
      %p210 = scmp.lt.s32.totalorder %s18, 1
      %s211 = scalar_select %p210, %s18, 1
      %p212 = scmp.lt.s32.totalorder %s19, 0
      %s213 = scalar_select %p212, %s19, 0
      %s214 = sadd.s32 %s213, %s211
      %s215 = smul.addr %s214, 8
      %s216 = scalar_lea.vmem %s3, %s215
      %v218 = vld [vmem:[%s202] sm:$0xff]
      %v219 = vpack.c.bf16 %v218, %v218
      %v220 = vld [vmem:[%s206] sm:$0xf]
      %v221 = vld [vmem:[%s206 + $0x4] sm:$0xf]
      %v222 = vld [vmem:[%s206 + $0x8] sm:$0xf]
      %v223 = vld [vmem:[%s206 + $0xc] sm:$0xf]
      %v224 = vld [vmem:[%s209] sm:$0x1]
      %v226 = vlaneseq
      %v227 = vshrl.u32 %v226, 7
      %v228 = vsub.s32 0, %v227
      %v229 = vrot.slane %v224, %v228
      %v235 = vunpack.c.l.b16 %v220
      %v236 = vunpack.c.l.b16 %v221
      %v237 = vunpack.c.l.b16 %v222
      %v238 = vunpack.c.l.b16 %v223
      %v239 = vpack.c.b16 %v236, %v235
      %v240 = vpack.c.b16 %v238, %v237
      %vm243 = vcmask 261120
      %v245 = vsel %vm243, %v219, 0
      %247 = vmatprep.subr.bf16.mxu0 0
      %248 = vmatpush1.bf16.msra.mxu0 0
      %249 = vmatprep.subr.bf16.mxu0 0
      %250 = vmatpush1.bf16.msra.mxu0 0
      %251 = vmatprep.subr.bf16.mxu0 0
      %252 = vmatpush1.bf16.msra.mxu0 0
      %253 = vmatprep.subr.bf16.mxu0 0
      %254 = vmatpush1.bf16.msra.mxu0 0
      %255 = vmatprep.subr.bf16.mxu0 0
      %256 = vmatpush1.bf16.msra.mxu0 0
      %257 = vmatprep.subr.bf16.mxu0 0
      %258 = vmatpush1.bf16.msra.mxu0 0
      %259 = vmatprep.subr.bf16.mxu0 0
      %260 = vmatpush1.bf16.msra.mxu0 %v240
      %261 = vmatprep.subr.bf16.mxu0 0
      %262 = vmatpush1.bf16.msra.mxu0 %v239
      %263 = vmatprep.subr.bf16.mxu0 0
      %264 = vmatpush2.bf16.msra.mxu0 0
      %265 = vmatprep.subr.bf16.mxu0 0
      %266 = vmatpush2.bf16.msra.mxu0 0
      %267 = vmatprep.subr.bf16.mxu0 0
      %268 = vmatpush2.bf16.msra.mxu0 0
      %269 = vmatprep.subr.bf16.mxu0 0
      %270 = vmatpush2.bf16.msra.mxu0 0
      %271 = vmatprep.subr.bf16.mxu0 0
      %272 = vmatpush2.bf16.msra.mxu0 0
      %273 = vmatprep.subr.bf16.mxu0 0
      %274 = vmatpush2.bf16.msra.mxu0 0
      %275 = vmatprep.subr.bf16.mxu0 0
      %276 = vmatpush2.bf16.msra.mxu0 0
      %277 = vmatprep.subr.bf16.mxu0 0
      %278 = vmatpush2.bf16.msra.mxu0 0
      %279 = vmatprep.mubr.bf16.mxu0 0
      %280 = vmatmul.mubr.bf16.gmra.mxu0 %v245
      %v281 = vpop.f32.mrf.mxu0
      %v282 = vadd.f32 %v229, %v281
      %v283 = vpop.f32.mrf.mxu0
      %v284 = vpop.f32.mrf.mxu0
      %v285 = vpop.f32.mrf.mxu0
      %286 = vdwg.mxu0
      %287 = vst [vmem:[%s216] sm:$0xff] %v282
      %p288 = scmp.lt.s32.totalorder %s18, 1
      %s289 = scalar_select %p288, %s18, 1
      %p290 = scmp.lt.s32.totalorder %s19, 0
      %s291 = scalar_select %p290, %s19, 0
      %s292 = sadd.s32 %s291, %s289
      %s293 = smul.addr %s292, 8
      %s294 = scalar_lea.vmem %s3, %s293
      // Predicated region
      $region33: #{_lambda_.3} parent=31 // pred_check
        %p295 = pneg %p124
      $region34: #{_lambda_.3} parent=31 // pred_check_branch
        %297 = sbr.rel (%p295) target = $region36
      $region35: #{_lambda_.3} parent=31 // pred_region
        _
      $region36: #{_lambda_.3} parent=31 // pred_fallthru
        _
    $region32: #{_lambda_.3} parent=5 // pred_fallthru
      _
    %p298 = scmp.le.s32.totalorder 2, %s9
    // Predicated region
    $region37: #{_lambda_.3} parent=5 // pred_check
      %p299 = pneg %p298
    $region38: #{_lambda_.3} parent=5 // pred_check_branch
      %301 = sbr.rel (%p299) target = $region40
    $region39: #{_lambda_.3} parent=5 // pred_region
      %s302 = ssub.s32 %s9, 2
      // Predicated region
      $region41: #{_lambda_.3} parent=39 // pred_check
        %p303 = pneg %p130
      $region42: #{_lambda_.3} parent=39 // pred_check_branch
        %305 = sbr.rel (%p303) target = $region44
      $region43: #{_lambda_.3} parent=39 // pred_region
        %p306 = scmp.lt.s32.totalorder %s20, 1
        %s307 = scalar_select %p306, %s20, 1
        %p308 = scmp.lt.s32.totalorder %s21, 0
        %s309 = scalar_select %p308, %s21, 0
        %s310 = sadd.s32 %s309, %s307
        %s311 = smul.addr %s310, 8
        %s312 = scalar_lea.vmem %s3, %s311
      $region44: #{_lambda_.3} parent=39 // pred_fallthru
        _
    $region40: #{_lambda_.3} parent=5 // pred_fallthru
      _
  $region6: #{_lambda_.3} parent=0 // loop_footer
    %s13 = sadd.s32 1, %s9
  $region7: #{_lambda_.3} parent=0 // loop_footer_branch
    %8 = sbr.rel target = $region3
  $region8: #{_lambda_.3} parent=0 // loop_exit
    _

// kernel: _lambda_.2
$region0: #{_lambda_.2}
  #allocation0 [shape = 'u32[]', space=smem, size = 0x4, offset = 0x4, fixed_abs, tag = 'smem constant byte address 0x4 - core index']
  #allocation1 [shape = 'u32[144,128]{1,0:T(1,128)}', space=vmem, size = 0x12000, scoped, tag = 'internal scratch']
  #allocation2 [shape = 'f32[1,8,32]{2,1,0:T(8,128)}', space=vmem, size = 0x1000, scoped, tag = 'scratch operand']
  #allocation3 [shape = 'f32[1,8,32]{2,1,0:T(8,128)}', space=vmem, size = 0x1000, scoped, tag = 'scratch operand']
  %s0 = inlined_call_operand.vmem [shape: f32[2,8,32], index: 0, kind: input, shape index: {}]
  %s1 = inlined_call_operand.vmem [shape: f32[8,32], index: 1, kind: input, shape index: {}]
  %s2 = inlined_call_operand.vmem [shape: f32[1,32], index: 2, kind: input, shape index: {}]
  %s3 = inlined_call_operand.vmem [shape: f32[1,32], index: 3, kind: input, shape index: {}]
  %s4 = inlined_call_operand.vmem [shape: bf16[2,32,96], index: 4, kind: input, shape index: {}]
  %s5 = inlined_call_operand.vmem [shape: f32[2,1,96], index: 5, kind: input, shape index: {}]
  %s6 = inlined_call_operand.vmem [shape: bf16[2,32,32], index: 6, kind: input, shape index: {}]
  %s7 = inlined_call_operand.vmem [shape: f32[2,1,32], index: 7, kind: input, shape index: {}]
  %s8 = inlined_call_operand.vmem [shape: f32[2,1,32], index: 8, kind: input, shape index: {}]
  %s9 = inlined_call_operand.vmem [shape: f32[2,1,32], index: 9, kind: input, shape index: {}]
  %s10 = inlined_call_operand.vmem [shape: bf16[2,32,64], index: 10, kind: input, shape index: {}]
  %s11 = inlined_call_operand.vmem [shape: f32[2,1,64], index: 11, kind: input, shape index: {}]
  %s12 = inlined_call_operand.vmem [shape: bf16[2,64,32], index: 12, kind: input, shape index: {}]
  %s13 = inlined_call_operand.vmem [shape: f32[2,1,32], index: 13, kind: input, shape index: {}]
  %s14 = inlined_call_operand.vmem [shape: f32[2,1,32], index: 14, kind: input, shape index: {}]
  %s15 = inlined_call_operand.vmem [shape: f32[2,1,32], index: 15, kind: input, shape index: {}]
  %s16 = inlined_call_operand.vmem [shape: f32[2,8,32], index: 16, kind: output, shape index: {}]
  %s17 = sld [smem:[#allocation0]]
  $region105: #{_lambda_.2} parent=0
    _
  %s19 = ssub.s32 1, %s17
  %s20 = scalar_select 0, %s19, %s17
  loop: start=0, step=1, limit=6
  $region2: #{_lambda_.2} parent=0 // loop_pre_header
    _
  $region3: #{_lambda_.2} parent=0 // loop_header
    %s22 = sphi 0, %s26
    %p23 = scmp.ge.s32.totalorder %s22, 6
    %s29 = sphi 0, %s41
    %s30 = sphi 0, %s37
    %s31 = sphi 0, %s29
    %s32 = sphi 0, %s30
    %s33 = sphi 0, %s31
    %s34 = sphi 0, %s32
    %s44 = sphi 0, %s46
    %s47 = sphi 0, %s44
    %s48 = sphi 0, %s47
    %s64 = sphi 0, %s48
    %s68 = sphi 0, %s68
    %s70 = sphi 0, %s68
    %s71 = sphi 0, %s70
    %s85 = sphi 0, %s71
    %s89 = sphi 0, %s89
    %s91 = sphi 0, %s89
    %s92 = sphi 0, %s91
    %s106 = sphi 0, %s92
    %s110 = sphi 0, %s110
    %s112 = sphi 0, %s110
    %s113 = sphi 0, %s112
    %s127 = sphi 0, %s113
    %s133 = sphi 0, %s135
    %s136 = sphi 0, %s133
    %s137 = sphi 0, %s136
    %s153 = sphi 0, %s137
    %s159 = sphi 0, %s161
    %s162 = sphi 0, %s159
    %s163 = sphi 0, %s162
    %s179 = sphi 0, %s163
    %s185 = sphi 0, %s187
    %s188 = sphi 0, %s185
    %s189 = sphi 0, %s188
    %s205 = sphi 0, %s189
    %s211 = sphi 0, %s213
    %s214 = sphi 0, %s211
    %s215 = sphi 0, %s214
    %s231 = sphi 0, %s215
    %s237 = sphi 0, %s239
    %s240 = sphi 0, %s237
    %s241 = sphi 0, %s240
    %s257 = sphi 0, %s241
    %s263 = sphi 0, %s265
    %s266 = sphi 0, %s263
    %s267 = sphi 0, %s266
    %s283 = sphi 0, %s267
    %s289 = sphi 0, %s291
    %s292 = sphi 0, %s289
    %s293 = sphi 0, %s292
    %s309 = sphi 0, %s293
    %s315 = sphi 0, %s317
    %s318 = sphi 0, %s315
    %s319 = sphi 0, %s318
    %s335 = sphi 0, %s319
    %s341 = sphi 0, %s343
    %s344 = sphi 0, %s341
    %s345 = sphi 0, %s344
    %s361 = sphi 0, %s345
    %s367 = sphi 0, %s369
    %s370 = sphi 0, %s367
    %s371 = sphi 0, %s370
    %s387 = sphi 0, %s371
    %s393 = sphi 0, %s395
    %s396 = sphi 0, %s393
    %s397 = sphi 0, %s396
    %s413 = sphi 0, %s397
    %s419 = sphi 0, %s421
    %s422 = sphi 0, %s419
    %s423 = sphi 0, %s422
    %s439 = sphi 0, %s423
    %s445 = sphi 0, %s447
    %s448 = sphi 0, %s445
    %s449 = sphi 0, %s448
    %s465 = sphi 0, %s449
  $region4: #{_lambda_.2} parent=0 // loop_header_branch
    %25 = sbr.rel (%p23) target = $region8
  $region5: #{_lambda_.2} parent=0 // loop_body
    %s27 = ssub.s32 %s22, 1
    %s28 = ssub.s32 %s22, 2
    %s35 = sadd.s32 1, %s30
    %p36 = scmp.ge.s32.totalorder %s35, 2
    %s37 = scalar_select %p36, 0, %s35
    %s38 = sadd.s32 1, %s29
    %s39 = scalar_select %p36, %s38, %s29
    %p40 = scmp.ge.s32.totalorder %s39, 2
    %s41 = scalar_select %p40, 0, %s39
    %s42 = ssub.s32 %s29, %s41
    %p43 = scmp.eq.s32.totalorder %s42, 0
    %s45 = sadd.s32 %s44, 1
    %s46 = scalar_select %p43, %s44, %s45
    %p49 = pneg %p43
    %p50 = scmp.eq.s32.totalorder %s22, 3
    %p51 = por %p49, %p50
    %p52 = scmp.ne.s32.totalorder %s44, %s47
    %p53 = scmp.eq.s32.totalorder %s22, 0
    %p54 = por %p52, %p53
    %p55 = scmp.ne.s32.totalorder %s44, %s47
    %p56 = scmp.eq.s32.totalorder %s27, 3
    %p57 = por %p55, %p56
    %p58 = scmp.ne.s32.totalorder %s47, %s48
    %p59 = scmp.eq.s32.totalorder %s27, 0
    %p60 = por %p58, %p59
    %p61 = scmp.ne.s32.totalorder %s47, %s48
    %p62 = scmp.eq.s32.totalorder %s28, 3
    %p63 = por %p61, %p62
    %p65 = scmp.ne.s32.totalorder %s48, %s64
    %p66 = scmp.eq.s32.totalorder %s28, 0
    %p67 = por %p65, %p66
    %s69 = sadd.s32 %s68, 1
    %p72 = scmp.eq.s32.totalorder %s22, 3
    %p73 = scmp.ne.s32.totalorder %s68, %s70
    %p74 = scmp.eq.s32.totalorder %s22, 0
    %p75 = por %p73, %p74
    %p76 = scmp.ne.s32.totalorder %s68, %s70
    %p77 = scmp.eq.s32.totalorder %s27, 3
    %p78 = por %p76, %p77
    %p79 = scmp.ne.s32.totalorder %s70, %s71
    %p80 = scmp.eq.s32.totalorder %s27, 0
    %p81 = por %p79, %p80
    %p82 = scmp.ne.s32.totalorder %s70, %s71
    %p83 = scmp.eq.s32.totalorder %s28, 3
    %p84 = por %p82, %p83
    %p86 = scmp.ne.s32.totalorder %s71, %s85
    %p87 = scmp.eq.s32.totalorder %s28, 0
    %p88 = por %p86, %p87
    %s90 = sadd.s32 %s89, 1
    %p93 = scmp.eq.s32.totalorder %s22, 3
    %p94 = scmp.ne.s32.totalorder %s89, %s91
    %p95 = scmp.eq.s32.totalorder %s22, 0
    %p96 = por %p94, %p95
    %p97 = scmp.ne.s32.totalorder %s89, %s91
    %p98 = scmp.eq.s32.totalorder %s27, 3
    %p99 = por %p97, %p98
    %p100 = scmp.ne.s32.totalorder %s91, %s92
    %p101 = scmp.eq.s32.totalorder %s27, 0
    %p102 = por %p100, %p101
    %p103 = scmp.ne.s32.totalorder %s91, %s92
    %p104 = scmp.eq.s32.totalorder %s28, 3
    %p105 = por %p103, %p104
    %p107 = scmp.ne.s32.totalorder %s92, %s106
    %p108 = scmp.eq.s32.totalorder %s28, 0
    %p109 = por %p107, %p108
    %s111 = sadd.s32 %s110, 1
    %p114 = scmp.eq.s32.totalorder %s22, 3
    %p115 = scmp.ne.s32.totalorder %s110, %s112
    %p116 = scmp.eq.s32.totalorder %s22, 0
    %p117 = por %p115, %p116
    %p118 = scmp.ne.s32.totalorder %s110, %s112
    %p119 = scmp.eq.s32.totalorder %s27, 3
    %p120 = por %p118, %p119
    %p121 = scmp.ne.s32.totalorder %s112, %s113
    %p122 = scmp.eq.s32.totalorder %s27, 0
    %p123 = por %p121, %p122
    %p124 = scmp.ne.s32.totalorder %s112, %s113
    %p125 = scmp.eq.s32.totalorder %s28, 3
    %p126 = por %p124, %p125
    %p128 = scmp.ne.s32.totalorder %s113, %s127
    %p129 = scmp.eq.s32.totalorder %s28, 0
    %p130 = por %p128, %p129
    %s131 = ssub.s32 %s30, %s37
    %p132 = scmp.eq.s32.totalorder %s131, 0
    %s134 = sadd.s32 %s133, 1
    %s135 = scalar_select %p132, %s133, %s134
    %p138 = pneg %p132
    %p139 = scmp.eq.s32.totalorder %s22, 3
    %p140 = por %p138, %p139
    %p141 = scmp.ne.s32.totalorder %s133, %s136
    %p142 = scmp.eq.s32.totalorder %s22, 0
    %p143 = por %p141, %p142
    %p144 = scmp.ne.s32.totalorder %s133, %s136
    %p145 = scmp.eq.s32.totalorder %s27, 3
    %p146 = por %p144, %p145
    %p147 = scmp.ne.s32.totalorder %s136, %s137
    %p148 = scmp.eq.s32.totalorder %s27, 0
    %p149 = por %p147, %p148
    %p150 = scmp.ne.s32.totalorder %s136, %s137
    %p151 = scmp.eq.s32.totalorder %s28, 3
    %p152 = por %p150, %p151
    %p154 = scmp.ne.s32.totalorder %s137, %s153
    %p155 = scmp.eq.s32.totalorder %s28, 0
    %p156 = por %p154, %p155
    %s157 = ssub.s32 %s30, %s37
    %p158 = scmp.eq.s32.totalorder %s157, 0
    %s160 = sadd.s32 %s159, 1
    %s161 = scalar_select %p158, %s159, %s160
    %p164 = pneg %p158
    %p165 = scmp.eq.s32.totalorder %s22, 3
    %p166 = por %p164, %p165
    %p167 = scmp.ne.s32.totalorder %s159, %s162
    %p168 = scmp.eq.s32.totalorder %s22, 0
    %p169 = por %p167, %p168
    %p170 = scmp.ne.s32.totalorder %s159, %s162
    %p171 = scmp.eq.s32.totalorder %s27, 3
    %p172 = por %p170, %p171
    %p173 = scmp.ne.s32.totalorder %s162, %s163
    %p174 = scmp.eq.s32.totalorder %s27, 0
    %p175 = por %p173, %p174
    %p176 = scmp.ne.s32.totalorder %s162, %s163
    %p177 = scmp.eq.s32.totalorder %s28, 3
    %p178 = por %p176, %p177
    %p180 = scmp.ne.s32.totalorder %s163, %s179
    %p181 = scmp.eq.s32.totalorder %s28, 0
    %p182 = por %p180, %p181
    %s183 = ssub.s32 %s30, %s37
    %p184 = scmp.eq.s32.totalorder %s183, 0
    %s186 = sadd.s32 %s185, 1
    %s187 = scalar_select %p184, %s185, %s186
    %p190 = pneg %p184
    %p191 = scmp.eq.s32.totalorder %s22, 3
    %p192 = por %p190, %p191
    %p193 = scmp.ne.s32.totalorder %s185, %s188
    %p194 = scmp.eq.s32.totalorder %s22, 0
    %p195 = por %p193, %p194
    %p196 = scmp.ne.s32.totalorder %s185, %s188
    %p197 = scmp.eq.s32.totalorder %s27, 3
    %p198 = por %p196, %p197
    %p199 = scmp.ne.s32.totalorder %s188, %s189
    %p200 = scmp.eq.s32.totalorder %s27, 0
    %p201 = por %p199, %p200
    %p202 = scmp.ne.s32.totalorder %s188, %s189
    %p203 = scmp.eq.s32.totalorder %s28, 3
    %p204 = por %p202, %p203
    %p206 = scmp.ne.s32.totalorder %s189, %s205
    %p207 = scmp.eq.s32.totalorder %s28, 0
    %p208 = por %p206, %p207
    %s209 = ssub.s32 %s30, %s37
    %p210 = scmp.eq.s32.totalorder %s209, 0
    %s212 = sadd.s32 %s211, 1
    %s213 = scalar_select %p210, %s211, %s212
    %p216 = pneg %p210
    %p217 = scmp.eq.s32.totalorder %s22, 3
    %p218 = por %p216, %p217
    %p219 = scmp.ne.s32.totalorder %s211, %s214
    %p220 = scmp.eq.s32.totalorder %s22, 0
    %p221 = por %p219, %p220
    %p222 = scmp.ne.s32.totalorder %s211, %s214
    %p223 = scmp.eq.s32.totalorder %s27, 3
    %p224 = por %p222, %p223
    %p225 = scmp.ne.s32.totalorder %s214, %s215
    %p226 = scmp.eq.s32.totalorder %s27, 0
    %p227 = por %p225, %p226
    %p228 = scmp.ne.s32.totalorder %s214, %s215
    %p229 = scmp.eq.s32.totalorder %s28, 3
    %p230 = por %p228, %p229
    %p232 = scmp.ne.s32.totalorder %s215, %s231
    %p233 = scmp.eq.s32.totalorder %s28, 0
    %p234 = por %p232, %p233
    %s235 = ssub.s32 %s30, %s37
    %p236 = scmp.eq.s32.totalorder %s235, 0
    %s238 = sadd.s32 %s237, 1
    %s239 = scalar_select %p236, %s237, %s238
    %p242 = pneg %p236
    %p243 = scmp.eq.s32.totalorder %s22, 3
    %p244 = por %p242, %p243
    %p245 = scmp.ne.s32.totalorder %s237, %s240
    %p246 = scmp.eq.s32.totalorder %s22, 0
    %p247 = por %p245, %p246
    %p248 = scmp.ne.s32.totalorder %s237, %s240
    %p249 = scmp.eq.s32.totalorder %s27, 3
    %p250 = por %p248, %p249
    %p251 = scmp.ne.s32.totalorder %s240, %s241
    %p252 = scmp.eq.s32.totalorder %s27, 0
    %p253 = por %p251, %p252
    %p254 = scmp.ne.s32.totalorder %s240, %s241
    %p255 = scmp.eq.s32.totalorder %s28, 3
    %p256 = por %p254, %p255
    %p258 = scmp.ne.s32.totalorder %s241, %s257
    %p259 = scmp.eq.s32.totalorder %s28, 0
    %p260 = por %p258, %p259
    %s261 = ssub.s32 %s30, %s37
    %p262 = scmp.eq.s32.totalorder %s261, 0
    %s264 = sadd.s32 %s263, 1
    %s265 = scalar_select %p262, %s263, %s264
    %p268 = pneg %p262
    %p269 = scmp.eq.s32.totalorder %s22, 3
    %p270 = por %p268, %p269
    %p271 = scmp.ne.s32.totalorder %s263, %s266
    %p272 = scmp.eq.s32.totalorder %s22, 0
    %p273 = por %p271, %p272
    %p274 = scmp.ne.s32.totalorder %s263, %s266
    %p275 = scmp.eq.s32.totalorder %s27, 3
    %p276 = por %p274, %p275
    %p277 = scmp.ne.s32.totalorder %s266, %s267
    %p278 = scmp.eq.s32.totalorder %s27, 0
    %p279 = por %p277, %p278
    %p280 = scmp.ne.s32.totalorder %s266, %s267
    %p281 = scmp.eq.s32.totalorder %s28, 3
    %p282 = por %p280, %p281
    %p284 = scmp.ne.s32.totalorder %s267, %s283
    %p285 = scmp.eq.s32.totalorder %s28, 0
    %p286 = por %p284, %p285
    %s287 = ssub.s32 %s30, %s37
    %p288 = scmp.eq.s32.totalorder %s287, 0
    %s290 = sadd.s32 %s289, 1
    %s291 = scalar_select %p288, %s289, %s290
    %p294 = pneg %p288
    %p295 = scmp.eq.s32.totalorder %s22, 3
    %p296 = por %p294, %p295
    %p297 = scmp.ne.s32.totalorder %s289, %s292
    %p298 = scmp.eq.s32.totalorder %s22, 0
    %p299 = por %p297, %p298
    %p300 = scmp.ne.s32.totalorder %s289, %s292
    %p301 = scmp.eq.s32.totalorder %s27, 3
    %p302 = por %p300, %p301
    %p303 = scmp.ne.s32.totalorder %s292, %s293
    %p304 = scmp.eq.s32.totalorder %s27, 0
    %p305 = por %p303, %p304
    %p306 = scmp.ne.s32.totalorder %s292, %s293
    %p307 = scmp.eq.s32.totalorder %s28, 3
    %p308 = por %p306, %p307
    %p310 = scmp.ne.s32.totalorder %s293, %s309
    %p311 = scmp.eq.s32.totalorder %s28, 0
    %p312 = por %p310, %p311
    %s313 = ssub.s32 %s30, %s37
    %p314 = scmp.eq.s32.totalorder %s313, 0
    %s316 = sadd.s32 %s315, 1
    %s317 = scalar_select %p314, %s315, %s316
    %p320 = pneg %p314
    %p321 = scmp.eq.s32.totalorder %s22, 3
    %p322 = por %p320, %p321
    %p323 = scmp.ne.s32.totalorder %s315, %s318
    %p324 = scmp.eq.s32.totalorder %s22, 0
    %p325 = por %p323, %p324
    %p326 = scmp.ne.s32.totalorder %s315, %s318
    %p327 = scmp.eq.s32.totalorder %s27, 3
    %p328 = por %p326, %p327
    %p329 = scmp.ne.s32.totalorder %s318, %s319
    %p330 = scmp.eq.s32.totalorder %s27, 0
    %p331 = por %p329, %p330
    %p332 = scmp.ne.s32.totalorder %s318, %s319
    %p333 = scmp.eq.s32.totalorder %s28, 3
    %p334 = por %p332, %p333
    %p336 = scmp.ne.s32.totalorder %s319, %s335
    %p337 = scmp.eq.s32.totalorder %s28, 0
    %p338 = por %p336, %p337
    %s339 = ssub.s32 %s30, %s37
    %p340 = scmp.eq.s32.totalorder %s339, 0
    %s342 = sadd.s32 %s341, 1
    %s343 = scalar_select %p340, %s341, %s342
    %p346 = pneg %p340
    %p347 = scmp.eq.s32.totalorder %s22, 3
    %p348 = por %p346, %p347
    %p349 = scmp.ne.s32.totalorder %s341, %s344
    %p350 = scmp.eq.s32.totalorder %s22, 0
    %p351 = por %p349, %p350
    %p352 = scmp.ne.s32.totalorder %s341, %s344
    %p353 = scmp.eq.s32.totalorder %s27, 3
    %p354 = por %p352, %p353
    %p355 = scmp.ne.s32.totalorder %s344, %s345
    %p356 = scmp.eq.s32.totalorder %s27, 0
    %p357 = por %p355, %p356
    %p358 = scmp.ne.s32.totalorder %s344, %s345
    %p359 = scmp.eq.s32.totalorder %s28, 3
    %p360 = por %p358, %p359
    %p362 = scmp.ne.s32.totalorder %s345, %s361
    %p363 = scmp.eq.s32.totalorder %s28, 0
    %p364 = por %p362, %p363
    %s365 = ssub.s32 %s30, %s37
    %p366 = scmp.eq.s32.totalorder %s365, 0
    %s368 = sadd.s32 %s367, 1
    %s369 = scalar_select %p366, %s367, %s368
    %p372 = pneg %p366
    %p373 = scmp.eq.s32.totalorder %s22, 3
    %p374 = por %p372, %p373
    %p375 = scmp.ne.s32.totalorder %s367, %s370
    %p376 = scmp.eq.s32.totalorder %s22, 0
    %p377 = por %p375, %p376
    %p378 = scmp.ne.s32.totalorder %s367, %s370
    %p379 = scmp.eq.s32.totalorder %s27, 3
    %p380 = por %p378, %p379
    %p381 = scmp.ne.s32.totalorder %s370, %s371
    %p382 = scmp.eq.s32.totalorder %s27, 0
    %p383 = por %p381, %p382
    %p384 = scmp.ne.s32.totalorder %s370, %s371
    %p385 = scmp.eq.s32.totalorder %s28, 3
    %p386 = por %p384, %p385
    %p388 = scmp.ne.s32.totalorder %s371, %s387
    %p389 = scmp.eq.s32.totalorder %s28, 0
    %p390 = por %p388, %p389
    %s391 = ssub.s32 %s30, %s37
    %p392 = scmp.eq.s32.totalorder %s391, 0
    %s394 = sadd.s32 %s393, 1
    %s395 = scalar_select %p392, %s393, %s394
    %p398 = pneg %p392
    %p399 = scmp.eq.s32.totalorder %s22, 3
    %p400 = por %p398, %p399
    %p401 = scmp.ne.s32.totalorder %s393, %s396
    %p402 = scmp.eq.s32.totalorder %s22, 0
    %p403 = por %p401, %p402
    %p404 = scmp.ne.s32.totalorder %s393, %s396
    %p405 = scmp.eq.s32.totalorder %s27, 3
    %p406 = por %p404, %p405
    %p407 = scmp.ne.s32.totalorder %s396, %s397
    %p408 = scmp.eq.s32.totalorder %s27, 0
    %p409 = por %p407, %p408
    %p410 = scmp.ne.s32.totalorder %s396, %s397
    %p411 = scmp.eq.s32.totalorder %s28, 3
    %p412 = por %p410, %p411
    %p414 = scmp.ne.s32.totalorder %s397, %s413
    %p415 = scmp.eq.s32.totalorder %s28, 0
    %p416 = por %p414, %p415
    %s417 = ssub.s32 %s30, %s37
    %p418 = scmp.eq.s32.totalorder %s417, 0
    %s420 = sadd.s32 %s419, 1
    %s421 = scalar_select %p418, %s419, %s420
    %p424 = pneg %p418
    %p425 = scmp.eq.s32.totalorder %s22, 3
    %p426 = por %p424, %p425
    %p427 = scmp.ne.s32.totalorder %s419, %s422
    %p428 = scmp.eq.s32.totalorder %s22, 0
    %p429 = por %p427, %p428
    %p430 = scmp.ne.s32.totalorder %s419, %s422
    %p431 = scmp.eq.s32.totalorder %s27, 3
    %p432 = por %p430, %p431
    %p433 = scmp.ne.s32.totalorder %s422, %s423
    %p434 = scmp.eq.s32.totalorder %s27, 0
    %p435 = por %p433, %p434
    %p436 = scmp.ne.s32.totalorder %s422, %s423
    %p437 = scmp.eq.s32.totalorder %s28, 3
    %p438 = por %p436, %p437
    %p440 = scmp.ne.s32.totalorder %s423, %s439
    %p441 = scmp.eq.s32.totalorder %s28, 0
    %p442 = por %p440, %p441
    %s443 = ssub.s32 %s29, %s41
    %p444 = scmp.eq.s32.totalorder %s443, 0
    %s446 = sadd.s32 %s445, 1
    %s447 = scalar_select %p444, %s445, %s446
    %p450 = pneg %p444
    %p451 = scmp.eq.s32.totalorder %s22, 3
    %p452 = por %p450, %p451
    %p453 = scmp.ne.s32.totalorder %s445, %s448
    %p454 = scmp.eq.s32.totalorder %s22, 0
    %p455 = por %p453, %p454
    %p456 = scmp.ne.s32.totalorder %s445, %s448
    %p457 = scmp.eq.s32.totalorder %s27, 3
    %p458 = por %p456, %p457
    %p459 = scmp.ne.s32.totalorder %s448, %s449
    %p460 = scmp.eq.s32.totalorder %s27, 0
    %p461 = por %p459, %p460
    %p462 = scmp.ne.s32.totalorder %s448, %s449
    %p463 = scmp.eq.s32.totalorder %s28, 3
    %p464 = por %p462, %p463
    %p466 = scmp.ne.s32.totalorder %s449, %s465
    %p467 = scmp.eq.s32.totalorder %s28, 0
    %p468 = por %p466, %p467
    %p469 = scmp.le.s32.totalorder 1, %s22
    %p470 = scmp.lt.s32.totalorder %s22, 5
    %p471 = pnand %p469, %p470
    %p472 = pneg %p471
    // Predicated region
    $region9: #{_lambda_.2} parent=5 // pred_check
      _
    $region10: #{_lambda_.2} parent=5 // pred_check_branch
      %474 = sbr.rel (%p471) target = $region12
    $region11: #{_lambda_.2} parent=5 // pred_region
      %s475 = ssub.s32 %s22, 1
      // Predicated region
      $region13: #{_lambda_.2} parent=11 // pred_check
        %p476 = pneg %p81
      $region14: #{_lambda_.2} parent=11 // pred_check_branch
        %478 = sbr.rel (%p476) target = $region16
      $region15: #{_lambda_.2} parent=11 // pred_region
        _
      $region16: #{_lambda_.2} parent=11 // pred_fallthru
        _
      // Predicated region
      $region17: #{_lambda_.2} parent=11 // pred_check
        %p479 = pneg %p102
      $region18: #{_lambda_.2} parent=11 // pred_check_branch
        %481 = sbr.rel (%p479) target = $region20
      $region19: #{_lambda_.2} parent=11 // pred_region
        _
      $region20: #{_lambda_.2} parent=11 // pred_fallthru
        _
      // Predicated region
      $region21: #{_lambda_.2} parent=11 // pred_check
        %p482 = pneg %p123
      $region22: #{_lambda_.2} parent=11 // pred_check_branch
        %484 = sbr.rel (%p482) target = $region24
      $region23: #{_lambda_.2} parent=11 // pred_region
        _
      $region24: #{_lambda_.2} parent=11 // pred_fallthru
        _
    $region12: #{_lambda_.2} parent=5 // pred_fallthru
      _
    %p485 = scmp.lt.s32.totalorder %s22, 4
    // Predicated region
    $region25: #{_lambda_.2} parent=5 // pred_check
      %p486 = pneg %p485
    $region26: #{_lambda_.2} parent=5 // pred_check_branch
      %488 = sbr.rel (%p486) target = $region28
    $region27: #{_lambda_.2} parent=5 // pred_region
      // Predicated region
      $region29: #{_lambda_.2} parent=27 // pred_check
        %p489 = pneg %p54
      $region30: #{_lambda_.2} parent=27 // pred_check_branch
        %491 = sbr.rel (%p489) target = $region32
      $region31: #{_lambda_.2} parent=27 // pred_region
        %p492 = scmp.lt.s32.totalorder %s29, 1
        %s493 = scalar_select %p492, %s29, 1
        %s494 = smul.addr %s493, 8
        %s495 = scalar_lea.vmem %s0, %s494
      $region32: #{_lambda_.2} parent=27 // pred_fallthru
        _
      // Predicated region
      $region33: #{_lambda_.2} parent=27 // pred_check
        %p496 = pneg %p143
      $region34: #{_lambda_.2} parent=27 // pred_check_branch
        %498 = sbr.rel (%p496) target = $region36
      $region35: #{_lambda_.2} parent=27 // pred_region
        %p499 = scmp.lt.s32.totalorder %s30, 1
        %s500 = scalar_select %p499, %s30, 1
        %s501 = smul.addr %s500, 4
        %s502 = smul.addr %s501, 4
        %s503 = scalar_lea.vmem %s4, %s502
      $region36: #{_lambda_.2} parent=27 // pred_fallthru
        _
      // Predicated region
      $region37: #{_lambda_.2} parent=27 // pred_check
        %p504 = pneg %p169
      $region38: #{_lambda_.2} parent=27 // pred_check_branch
        %506 = sbr.rel (%p504) target = $region40
      $region39: #{_lambda_.2} parent=27 // pred_region
        %p507 = scmp.lt.s32.totalorder %s30, 1
        %s508 = scalar_select %p507, %s30, 1
        %s509 = scalar_lea.vmem %s5, %s508
      $region40: #{_lambda_.2} parent=27 // pred_fallthru
        _
      // Predicated region
      $region41: #{_lambda_.2} parent=27 // pred_check
        %p510 = pneg %p195
      $region42: #{_lambda_.2} parent=27 // pred_check_branch
        %512 = sbr.rel (%p510) target = $region44
      $region43: #{_lambda_.2} parent=27 // pred_region
        %p513 = scmp.lt.s32.totalorder %s30, 1
        %s514 = scalar_select %p513, %s30, 1
        %s515 = smul.addr %s514, 4
        %s516 = smul.addr %s515, 4
        %s517 = scalar_lea.vmem %s6, %s516
      $region44: #{_lambda_.2} parent=27 // pred_fallthru
        _
      // Predicated region
      $region45: #{_lambda_.2} parent=27 // pred_check
        %p518 = pneg %p221
      $region46: #{_lambda_.2} parent=27 // pred_check_branch
        %520 = sbr.rel (%p518) target = $region48
      $region47: #{_lambda_.2} parent=27 // pred_region
        %p521 = scmp.lt.s32.totalorder %s30, 1
        %s522 = scalar_select %p521, %s30, 1
        %s523 = scalar_lea.vmem %s7, %s522
      $region48: #{_lambda_.2} parent=27 // pred_fallthru
        _
      // Predicated region
      $region49: #{_lambda_.2} parent=27 // pred_check
        %p524 = pneg %p247
      $region50: #{_lambda_.2} parent=27 // pred_check_branch
        %526 = sbr.rel (%p524) target = $region52
      $region51: #{_lambda_.2} parent=27 // pred_region
        %p527 = scmp.lt.s32.totalorder %s30, 1
        %s528 = scalar_select %p527, %s30, 1
        %s529 = scalar_lea.vmem %s8, %s528
      $region52: #{_lambda_.2} parent=27 // pred_fallthru
        _
      // Predicated region
      $region53: #{_lambda_.2} parent=27 // pred_check
        %p530 = pneg %p273
      $region54: #{_lambda_.2} parent=27 // pred_check_branch
        %532 = sbr.rel (%p530) target = $region56
      $region55: #{_lambda_.2} parent=27 // pred_region
        %p533 = scmp.lt.s32.totalorder %s30, 1
        %s534 = scalar_select %p533, %s30, 1
        %s535 = scalar_lea.vmem %s9, %s534
      $region56: #{_lambda_.2} parent=27 // pred_fallthru
        _
      // Predicated region
      $region57: #{_lambda_.2} parent=27 // pred_check
        %p536 = pneg %p299
      $region58: #{_lambda_.2} parent=27 // pred_check_branch
        %538 = sbr.rel (%p536) target = $region60
      $region59: #{_lambda_.2} parent=27 // pred_region
        %p539 = scmp.lt.s32.totalorder %s30, 1
        %s540 = scalar_select %p539, %s30, 1
        %s541 = smul.addr %s540, 4
        %s542 = smul.addr %s541, 4
        %s543 = scalar_lea.vmem %s10, %s542
      $region60: #{_lambda_.2} parent=27 // pred_fallthru
        _
      // Predicated region
      $region61: #{_lambda_.2} parent=27 // pred_check
        %p544 = pneg %p325
      $region62: #{_lambda_.2} parent=27 // pred_check_branch
        %546 = sbr.rel (%p544) target = $region64
      $region63: #{_lambda_.2} parent=27 // pred_region
        %p547 = scmp.lt.s32.totalorder %s30, 1
        %s548 = scalar_select %p547, %s30, 1
        %s549 = scalar_lea.vmem %s11, %s548
      $region64: #{_lambda_.2} parent=27 // pred_fallthru
        _
      // Predicated region
      $region65: #{_lambda_.2} parent=27 // pred_check
        %p550 = pneg %p351
      $region66: #{_lambda_.2} parent=27 // pred_check_branch
        %552 = sbr.rel (%p550) target = $region68
      $region67: #{_lambda_.2} parent=27 // pred_region
        %p553 = scmp.lt.s32.totalorder %s30, 1
        %s554 = scalar_select %p553, %s30, 1
        %s555 = smul.addr %s554, 8
        %s556 = smul.addr %s555, 4
        %s557 = scalar_lea.vmem %s12, %s556
      $region68: #{_lambda_.2} parent=27 // pred_fallthru
        _
      // Predicated region
      $region69: #{_lambda_.2} parent=27 // pred_check
        %p558 = pneg %p377
      $region70: #{_lambda_.2} parent=27 // pred_check_branch
        %560 = sbr.rel (%p558) target = $region72
      $region71: #{_lambda_.2} parent=27 // pred_region
        %p561 = scmp.lt.s32.totalorder %s30, 1
        %s562 = scalar_select %p561, %s30, 1
        %s563 = scalar_lea.vmem %s13, %s562
      $region72: #{_lambda_.2} parent=27 // pred_fallthru
        _
      // Predicated region
      $region73: #{_lambda_.2} parent=27 // pred_check
        %p564 = pneg %p403
      $region74: #{_lambda_.2} parent=27 // pred_check_branch
        %566 = sbr.rel (%p564) target = $region76
      $region75: #{_lambda_.2} parent=27 // pred_region
        %p567 = scmp.lt.s32.totalorder %s30, 1
        %s568 = scalar_select %p567, %s30, 1
        %s569 = scalar_lea.vmem %s14, %s568
      $region76: #{_lambda_.2} parent=27 // pred_fallthru
        _
      // Predicated region
      $region77: #{_lambda_.2} parent=27 // pred_check
        %p570 = pneg %p429
      $region78: #{_lambda_.2} parent=27 // pred_check_branch
        %572 = sbr.rel (%p570) target = $region80
      $region79: #{_lambda_.2} parent=27 // pred_region
        %p573 = scmp.lt.s32.totalorder %s30, 1
        %s574 = scalar_select %p573, %s30, 1
        %s575 = scalar_lea.vmem %s15, %s574
      $region80: #{_lambda_.2} parent=27 // pred_fallthru
        _
    $region28: #{_lambda_.2} parent=5 // pred_fallthru
      _
    %p576 = scmp.le.s32.totalorder 1, %s22
    %p577 = scmp.lt.s32.totalorder %s22, 5
    %p578 = pnand %p576, %p577
    %p579 = pneg %p578
    // Predicated region
    $region81: #{_lambda_.2} parent=5 // pred_check
      _
    $region82: #{_lambda_.2} parent=5 // pred_check_branch
      %581 = sbr.rel (%p578) target = $region84
    $region83: #{_lambda_.2} parent=5 // pred_region
      %s582 = ssub.s32 %s22, 1
      %p583 = scmp.lt.s32.totalorder %s31, 1
      %s584 = scalar_select %p583, %s31, 1
      %s585 = smul.addr %s584, 8
      %s586 = scalar_lea.vmem %s0, %s585
      %p587 = pneg %p60
      %p588 = pneg %p57
      %p589 = pneg %p81
      %p590 = pneg %p78
      %p591 = pneg %p102
      %p592 = pneg %p99
      %p593 = pneg %p123
      %p594 = pneg %p120
      %p595 = scmp.lt.s32.totalorder %s32, 1
      %s596 = scalar_select %p595, %s32, 1
      %s597 = smul.addr %s596, 4
      %s598 = smul.addr %s597, 4
      %s599 = scalar_lea.vmem %s4, %s598
      %p600 = pneg %p149
      %p601 = pneg %p146
      %p602 = scmp.lt.s32.totalorder %s32, 1
      %s603 = scalar_select %p602, %s32, 1
      %s604 = scalar_lea.vmem %s5, %s603
      %p605 = pneg %p175
      %p606 = pneg %p172
      %p607 = scmp.lt.s32.totalorder %s32, 1
      %s608 = scalar_select %p607, %s32, 1
      %s609 = smul.addr %s608, 4
      %s610 = smul.addr %s609, 4
      %s611 = scalar_lea.vmem %s6, %s610
      %p612 = pneg %p201
      %p613 = pneg %p198
      %p614 = scmp.lt.s32.totalorder %s32, 1
      %s615 = scalar_select %p614, %s32, 1
      %s616 = scalar_lea.vmem %s7, %s615
      %p617 = pneg %p227
      %p618 = pneg %p224
      %p619 = scmp.lt.s32.totalorder %s32, 1
      %s620 = scalar_select %p619, %s32, 1
      %s621 = scalar_lea.vmem %s8, %s620
      %p622 = pneg %p253
      %p623 = pneg %p250
      %p624 = scmp.lt.s32.totalorder %s32, 1
      %s625 = scalar_select %p624, %s32, 1
      %s626 = scalar_lea.vmem %s9, %s625
      %p627 = pneg %p279
      %p628 = pneg %p276
      %p629 = scmp.lt.s32.totalorder %s32, 1
      %s630 = scalar_select %p629, %s32, 1
      %s631 = smul.addr %s630, 4
      %s632 = smul.addr %s631, 4
      %s633 = scalar_lea.vmem %s10, %s632
      %p634 = pneg %p305
      %p635 = pneg %p302
      %p636 = scmp.lt.s32.totalorder %s32, 1
      %s637 = scalar_select %p636, %s32, 1
      %s638 = scalar_lea.vmem %s11, %s637
      %p639 = pneg %p331
      %p640 = pneg %p328
      %p641 = scmp.lt.s32.totalorder %s32, 1
      %s642 = scalar_select %p641, %s32, 1
      %s643 = smul.addr %s642, 8
      %s644 = smul.addr %s643, 4
      %s645 = scalar_lea.vmem %s12, %s644
      %p646 = pneg %p357
      %p647 = pneg %p354
      %p648 = scmp.lt.s32.totalorder %s32, 1
      %s649 = scalar_select %p648, %s32, 1
      %s650 = scalar_lea.vmem %s13, %s649
      %p651 = pneg %p383
      %p652 = pneg %p380
      %p653 = scmp.lt.s32.totalorder %s32, 1
      %s654 = scalar_select %p653, %s32, 1
      %s655 = scalar_lea.vmem %s14, %s654
      %p656 = pneg %p409
      %p657 = pneg %p406
      %p658 = scmp.lt.s32.totalorder %s32, 1
      %s659 = scalar_select %p658, %s32, 1
      %s660 = scalar_lea.vmem %s15, %s659
      %p661 = pneg %p435
      %p662 = pneg %p432
      %p663 = pneg %p461
      %p664 = pneg %p458
      %p665 = scmp.lt.s32.totalorder %s31, 1
      %s666 = scalar_select %p665, %s31, 1
      %s667 = smul.addr %s666, 8
      %s668 = scalar_lea.vmem %s16, %s667
      %p669 = scmp.lt.s32.totalorder %s31, 1
      %s670 = scalar_select %p669, %s31, 1
      %s671 = smul.addr %s670, 8
      %s672 = scalar_lea.vmem %s0, %s671
      %p673 = scmp.lt.s32.totalorder %s32, 1
      %s674 = scalar_select %p673, %s32, 1
      %s675 = smul.addr %s674, 4
      %s676 = smul.addr %s675, 4
      %s677 = scalar_lea.vmem %s4, %s676
      %p678 = scmp.lt.s32.totalorder %s32, 1
      %s679 = scalar_select %p678, %s32, 1
      %s680 = scalar_lea.vmem %s5, %s679
      %p681 = scmp.lt.s32.totalorder %s32, 1
      %s682 = scalar_select %p681, %s32, 1
      %s683 = smul.addr %s682, 4
      %s684 = smul.addr %s683, 4
      %s685 = scalar_lea.vmem %s6, %s684
      %p686 = scmp.lt.s32.totalorder %s32, 1
      %s687 = scalar_select %p686, %s32, 1
      %s688 = scalar_lea.vmem %s7, %s687
      %p689 = scmp.lt.s32.totalorder %s32, 1
      %s690 = scalar_select %p689, %s32, 1
      %s691 = scalar_lea.vmem %s8, %s690
      %p692 = scmp.lt.s32.totalorder %s32, 1
      %s693 = scalar_select %p692, %s32, 1
      %s694 = scalar_lea.vmem %s9, %s693
      %p695 = scmp.lt.s32.totalorder %s32, 1
      %s696 = scalar_select %p695, %s32, 1
      %s697 = smul.addr %s696, 4
      %s698 = smul.addr %s697, 4
      %s699 = scalar_lea.vmem %s10, %s698
      %p700 = scmp.lt.s32.totalorder %s32, 1
      %s701 = scalar_select %p700, %s32, 1
      %s702 = scalar_lea.vmem %s11, %s701
      %p703 = scmp.lt.s32.totalorder %s32, 1
      %s704 = scalar_select %p703, %s32, 1
      %s705 = smul.addr %s704, 8
      %s706 = smul.addr %s705, 4
      %s707 = scalar_lea.vmem %s12, %s706
      %p708 = scmp.lt.s32.totalorder %s32, 1
      %s709 = scalar_select %p708, %s32, 1
      %s710 = scalar_lea.vmem %s13, %s709
      %p711 = scmp.lt.s32.totalorder %s32, 1
      %s712 = scalar_select %p711, %s32, 1
      %s713 = scalar_lea.vmem %s14, %s712
      %p714 = scmp.lt.s32.totalorder %s32, 1
      %s715 = scalar_select %p714, %s32, 1
      %s716 = scalar_lea.vmem %s15, %s715
      %p717 = scmp.lt.s32.totalorder %s31, 1
      %s718 = scalar_select %p717, %s31, 1
      %s719 = smul.addr %s718, 8
      %s720 = scalar_lea.vmem %s16, %s719
      %p722 = scmp.eq.s32.totalorder %s32, 0
      // Predicated region
      $region85: #{_lambda_.2} parent=83 // pred_check
        %p723 = pneg %p722
      $region86: #{_lambda_.2} parent=83 // pred_check_branch
        %725 = sbr.rel (%p723) target = $region88
      $region87: #{_lambda_.2} parent=83 // pred_region
        %v726 = vld [vmem:[%s672] sm:$0xff]
        %v727 = vld [vmem:[%s1] sm:$0xff]
        %v728 = vadd.f32 %v726, %v727
        %v729 = vld [vmem:[%s2] sm:$0x1]
        %v730 = vld [vmem:[%s3] sm:$0x1]
        %vm731 = vcmask 261120
        %v732 = vsel %vm731, %v728, 0.0
        %733 = vadd.xlane.f32.xlu0 %v732
        %v734 = vpop.xlane.xlu0 %733
        %v735 = vrcp.pop 32.0
        %v736 = vmul.f32 %v734, %v735
        %v737 = vsub.f32 %v728, %v736
        %v738 = vmul.f32 %v737, %v737
        %v739 = vsel %vm731, %v738, 0.0
        %740 = vadd.xlane.f32.xlu0 %v739
        %v741 = vpop.xlane.xlu0 %740
        %v742 = vmul.f32 %v741, %v735
        %v743 = vadd.f32 %v742, 1e-05
        %v744 = vrsqrt.pop %v743
        %v745 = vmul.f32 %v737, %v744
        %v747 = vlaneseq
        %v748 = vshrl.u32 %v747, 7
        %v749 = vsub.s32 0, %v748
        %v750 = vrot.slane %v729, %v749
        %v752 = vmul.f32 %v745, %v750
        %v754 = vlaneseq
        %v755 = vshrl.u32 %v754, 7
        %v756 = vsub.s32 0, %v755
        %v757 = vrot.slane %v730, %v756
        %v759 = vadd.f32 %v752, %v757
        %760 = vst.msk [vmem:[#allocation2] sm:$0xff] %vm731, %v759
      $region88: #{_lambda_.2} parent=83 // pred_fallthru
        _
      %v761 = vld [vmem:[#allocation2] sm:$0xff]
      %v762 = vpack.c.bf16 %v761, %v761
      %v763 = vld [vmem:[%s677] sm:$0xf]
      %v764 = vld [vmem:[%s677 + $0x4] sm:$0xf]
      %v765 = vld [vmem:[%s677 + $0x8] sm:$0xf]
      %v766 = vld [vmem:[%s677 + $0xc] sm:$0xf]
      %v767 = vld [vmem:[%s680] sm:$0x1]
      %v769 = vlaneseq
      %v770 = vshrl.u32 %v769, 7
      %v771 = vsub.s32 0, %v770
      %v772 = vrot.slane %v767, %v771
      %v778 = vunpack.c.l.b16 %v763
      %v779 = vunpack.c.l.b16 %v764
      %v780 = vunpack.c.l.b16 %v765
      %v781 = vunpack.c.l.b16 %v766
      %v782 = vpack.c.b16 %v779, %v778
      %v783 = vpack.c.b16 %v781, %v780
      %vm786 = vcmask 261120
      %v788 = vsel %vm786, %v762, 0
      %790 = vmatprep.subr.bf16.mxu0 0
      %791 = vmatpush1.bf16.msra.mxu0 0
      %792 = vmatprep.subr.bf16.mxu0 0
      %793 = vmatpush1.bf16.msra.mxu0 0
      %794 = vmatprep.subr.bf16.mxu0 0
      %795 = vmatpush1.bf16.msra.mxu0 0
      %796 = vmatprep.subr.bf16.mxu0 0
      %797 = vmatpush1.bf16.msra.mxu0 0
      %798 = vmatprep.subr.bf16.mxu0 0
      %799 = vmatpush1.bf16.msra.mxu0 0
      %800 = vmatprep.subr.bf16.mxu0 0
      %801 = vmatpush1.bf16.msra.mxu0 0
      %802 = vmatprep.subr.bf16.mxu0 0
      %803 = vmatpush1.bf16.msra.mxu0 %v783
      %804 = vmatprep.subr.bf16.mxu0 0
      %805 = vmatpush1.bf16.msra.mxu0 %v782
      %806 = vmatprep.subr.bf16.mxu0 0
      %807 = vmatpush2.bf16.msra.mxu0 0
      %808 = vmatprep.subr.bf16.mxu0 0
      %809 = vmatpush2.bf16.msra.mxu0 0
      %810 = vmatprep.subr.bf16.mxu0 0
      %811 = vmatpush2.bf16.msra.mxu0 0
      %812 = vmatprep.subr.bf16.mxu0 0
      %813 = vmatpush2.bf16.msra.mxu0 0
      %814 = vmatprep.subr.bf16.mxu0 0
      %815 = vmatpush2.bf16.msra.mxu0 0
      %816 = vmatprep.subr.bf16.mxu0 0
      %817 = vmatpush2.bf16.msra.mxu0 0
      %818 = vmatprep.subr.bf16.mxu0 0
      %819 = vmatpush2.bf16.msra.mxu0 0
      %820 = vmatprep.subr.bf16.mxu0 0
      %821 = vmatpush2.bf16.msra.mxu0 0
      %822 = vmatprep.mubr.bf16.mxu0 0
      %823 = vmatmul.mubr.bf16.gmra.mxu0 %v788
      %v824 = vpop.f32.mrf.mxu0
      %v825 = vadd.f32 %v772, %v824
      %v826 = vpop.f32.mrf.mxu0
      %v827 = vpop.f32.mrf.mxu0
      %v828 = vpop.f32.mrf.mxu0
      %829 = vdwg.mxu0
      %v830 = vmul.f32 %v825, 0.35355338
      %v831 = vpack.c.bf16 %v830, %v830
      %v832 = vpack.c.bf16 %v825, %v825
      %834 = vrot.lane.b32.xlu0 %v832, 96
      %v835 = vpop.permute.xlu0 %834
      %vm836 = vcmask 64512
      %v838 = vsel %vm836, %v831, 0
      %v841 = vsel %vm836, %v835, 0
      %843 = vmatprep.subr.bf16.mxu0 0
      %844 = vmatpush1.bf16.xpose.msra.mxu0 0
      %845 = vmatprep.subr.bf16.mxu0 0
      %846 = vmatpush1.bf16.xpose.msra.mxu0 0
      %847 = vmatprep.subr.bf16.mxu0 0
      %848 = vmatpush1.bf16.xpose.msra.mxu0 0
      %849 = vmatprep.subr.bf16.mxu0 0
      %850 = vmatpush1.bf16.xpose.msra.mxu0 0
      %851 = vmatprep.subr.bf16.mxu0 0
      %852 = vmatpush1.bf16.xpose.msra.mxu0 0
      %853 = vmatprep.subr.bf16.mxu0 0
      %854 = vmatpush1.bf16.xpose.msra.mxu0 0
      %855 = vmatprep.subr.bf16.mxu0 0
      %856 = vmatpush1.bf16.xpose.msra.mxu0 0
      %857 = vmatprep.subr.bf16.mxu0 0
      %858 = vmatpush1.bf16.xpose.msra.mxu0 %v841
      %859 = vmatprep.subr.bf16.mxu0 0
      %860 = vmatpush2.bf16.xpose.msra.mxu0 0
      %861 = vmatprep.subr.bf16.mxu0 0
      %862 = vmatpush2.bf16.xpose.msra.mxu0 0
      %863 = vmatprep.subr.bf16.mxu0 0
      %864 = vmatpush2.bf16.xpose.msra.mxu0 0
      %865 = vmatprep.subr.bf16.mxu0 0
      %866 = vmatpush2.bf16.xpose.msra.mxu0 0
      %867 = vmatprep.subr.bf16.mxu0 0
      %868 = vmatpush2.bf16.xpose.msra.mxu0 0
      %869 = vmatprep.subr.bf16.mxu0 0
      %870 = vmatpush2.bf16.xpose.msra.mxu0 0
      %871 = vmatprep.subr.bf16.mxu0 0
      %872 = vmatpush2.bf16.xpose.msra.mxu0 0
      %873 = vmatprep.subr.bf16.mxu0 0
      %874 = vmatpush2.bf16.xpose.msra.mxu0 0
      %875 = vmatprep.mubr.bf16.mxu0 0
      %876 = vmatmul.mubr.bf16.gmra.mxu0 %v838
      %v877 = vpop.f32.mrf.mxu0
      %v878 = vadd.f32 0.0, %v877
      %v879 = vpop.f32.mrf.mxu0
      %v880 = vpop.f32.mrf.mxu0
      %v881 = vpop.f32.mrf.mxu0
      %882 = vdwg.mxu0
      %v883 = vsel %vm836, %v878, -inf
      %884 = vmax.xlane.f32.xlu0 %v883
      %v885 = vpop.xlane.xlu0 %884
      %v886 = vsub.f32 %v878, %v885
      %v887 = vmul.f32 %v886, 1.442695
      %v888 = vpow.pop %v887
      %v889 = vsel %vm836, %v888, 0.0
      %890 = vadd.xlane.f32.xlu0 %v889
      %v891 = vpop.xlane.xlu0 %890
      %v892 = vrcp.pop %v891
      %v893 = vmul.f32 %v888, %v892
      %v894 = vpack.c.bf16 %v893, %v893
      %895 = vrot.lane.b32.xlu0 %v832, 64
      %v896 = vpop.permute.xlu0 %895
      %v898 = vsel %vm836, %v894, 0
      %vm900 = vcmask 1043456
      %v902 = vsel %vm900, %v896, 0
      %904 = vmatprep.subr.bf16.mxu0 0
      %905 = vmatpush1.bf16.msra.mxu0 0
      %906 = vmatprep.subr.bf16.mxu0 0
      %907 = vmatpush1.bf16.msra.mxu0 0
      %908 = vmatprep.subr.bf16.mxu0 0
      %909 = vmatpush1.bf16.msra.mxu0 0
      %910 = vmatprep.subr.bf16.mxu0 0
      %911 = vmatpush1.bf16.msra.mxu0 0
      %912 = vmatprep.subr.bf16.mxu0 0
      %913 = vmatpush1.bf16.msra.mxu0 0
      %914 = vmatprep.subr.bf16.mxu0 0
      %915 = vmatpush1.bf16.msra.mxu0 0
      %916 = vmatprep.subr.bf16.mxu0 0
      %917 = vmatpush1.bf16.msra.mxu0 0
      %918 = vmatprep.subr.bf16.mxu0 0
      %919 = vmatpush1.bf16.msra.mxu0 %v902
      %920 = vmatprep.subr.bf16.mxu0 0
      %921 = vmatpush2.bf16.msra.mxu0 0
      %922 = vmatprep.subr.bf16.mxu0 0
      %923 = vmatpush2.bf16.msra.mxu0 0
      %924 = vmatprep.subr.bf16.mxu0 0
      %925 = vmatpush2.bf16.msra.mxu0 0
      %926 = vmatprep.subr.bf16.mxu0 0
      %927 = vmatpush2.bf16.msra.mxu0 0
      %928 = vmatprep.subr.bf16.mxu0 0
      %929 = vmatpush2.bf16.msra.mxu0 0
      %930 = vmatprep.subr.bf16.mxu0 0
      %931 = vmatpush2.bf16.msra.mxu0 0
      %932 = vmatprep.subr.bf16.mxu0 0
      %933 = vmatpush2.bf16.msra.mxu0 0
      %934 = vmatprep.subr.bf16.mxu0 0
      %935 = vmatpush2.bf16.msra.mxu0 0
      %936 = vmatprep.mubr.bf16.mxu0 0
      %937 = vmatmul.mubr.bf16.gmra.mxu0 %v898
      %v938 = vpop.f32.mrf.mxu0
      %v939 = vadd.f32 0.0, %v938
      %v940 = vpop.f32.mrf.mxu0
      %v941 = vpop.f32.mrf.mxu0
      %v942 = vpop.f32.mrf.mxu0
      %943 = vdwg.mxu0
      %944 = vst.msk [vmem:[#allocation3] sm:$0xff] %vm836, %v939
      %946 = vrot.lane.b32.xlu0 %v831, 120
      %v947 = vpop.permute.xlu0 %946
      %948 = vrot.lane.b32.xlu0 %v832, 88
      %v949 = vpop.permute.xlu0 %948
      %v951 = vsel %vm836, %v947, 0
      %v954 = vsel %vm836, %v949, 0
      %956 = vmatprep.subr.bf16.mxu0 0
      %957 = vmatpush1.bf16.xpose.msra.mxu0 0
      %958 = vmatprep.subr.bf16.mxu0 0
      %959 = vmatpush1.bf16.xpose.msra.mxu0 0
      %960 = vmatprep.subr.bf16.mxu0 0
      %961 = vmatpush1.bf16.xpose.msra.mxu0 0
      %962 = vmatprep.subr.bf16.mxu0 0
      %963 = vmatpush1.bf16.xpose.msra.mxu0 0
      %964 = vmatprep.subr.bf16.mxu0 0
      %965 = vmatpush1.bf16.xpose.msra.mxu0 0
      %966 = vmatprep.subr.bf16.mxu0 0
      %967 = vmatpush1.bf16.xpose.msra.mxu0 0
      %968 = vmatprep.subr.bf16.mxu0 0
      %969 = vmatpush1.bf16.xpose.msra.mxu0 0
      %970 = vmatprep.subr.bf16.mxu0 0
      %971 = vmatpush1.bf16.xpose.msra.mxu0 %v954
      %972 = vmatprep.subr.bf16.mxu0 0
      %973 = vmatpush2.bf16.xpose.msra.mxu0 0
      %974 = vmatprep.subr.bf16.mxu0 0
      %975 = vmatpush2.bf16.xpose.msra.mxu0 0
      %976 = vmatprep.subr.bf16.mxu0 0
      %977 = vmatpush2.bf16.xpose.msra.mxu0 0
      %978 = vmatprep.subr.bf16.mxu0 0
      %979 = vmatpush2.bf16.xpose.msra.mxu0 0
      %980 = vmatprep.subr.bf16.mxu0 0
      %981 = vmatpush2.bf16.xpose.msra.mxu0 0
      %982 = vmatprep.subr.bf16.mxu0 0
      %983 = vmatpush2.bf16.xpose.msra.mxu0 0
      %984 = vmatprep.subr.bf16.mxu0 0
      %985 = vmatpush2.bf16.xpose.msra.mxu0 0
      %986 = vmatprep.subr.bf16.mxu0 0
      %987 = vmatpush2.bf16.xpose.msra.mxu0 0
      %988 = vmatprep.mubr.bf16.mxu0 0
      %989 = vmatmul.mubr.bf16.gmra.mxu0 %v951
      %v990 = vpop.f32.mrf.mxu0
      %v991 = vadd.f32 0.0, %v990
      %v992 = vpop.f32.mrf.mxu0
      %v993 = vpop.f32.mrf.mxu0
      %v994 = vpop.f32.mrf.mxu0
      %995 = vdwg.mxu0
      %v996 = vsel %vm836, %v991, -inf
      %997 = vmax.xlane.f32.xlu0 %v996
      %v998 = vpop.xlane.xlu0 %997
      %v999 = vsub.f32 %v991, %v998
      %v1000 = vmul.f32 %v999, 1.442695
      %v1001 = vpow.pop %v1000
      %v1002 = vsel %vm836, %v1001, 0.0
      %1003 = vadd.xlane.f32.xlu0 %v1002
      %v1004 = vpop.xlane.xlu0 %1003
      %v1005 = vrcp.pop %v1004
      %v1006 = vmul.f32 %v1001, %v1005
      %v1007 = vpack.c.bf16 %v1006, %v1006
      %1008 = vrot.lane.b32.xlu0 %v832, 56
      %v1009 = vpop.permute.xlu0 %1008
      %v1011 = vsel %vm836, %v1007, 0
      %v1014 = vsel %vm900, %v1009, 0
      %1016 = vmatprep.subr.bf16.mxu0 0
      %1017 = vmatpush1.bf16.msra.mxu0 0
      %1018 = vmatprep.subr.bf16.mxu0 0
      %1019 = vmatpush1.bf16.msra.mxu0 0
      %1020 = vmatprep.subr.bf16.mxu0 0
      %1021 = vmatpush1.bf16.msra.mxu0 0
      %1022 = vmatprep.subr.bf16.mxu0 0
      %1023 = vmatpush1.bf16.msra.mxu0 0
      %1024 = vmatprep.subr.bf16.mxu0 0
      %1025 = vmatpush1.bf16.msra.mxu0 0
      %1026 = vmatprep.subr.bf16.mxu0 0
      %1027 = vmatpush1.bf16.msra.mxu0 0
      %1028 = vmatprep.subr.bf16.mxu0 0
      %1029 = vmatpush1.bf16.msra.mxu0 0
      %1030 = vmatprep.subr.bf16.mxu0 0
      %1031 = vmatpush1.bf16.msra.mxu0 %v1014
      %1032 = vmatprep.subr.bf16.mxu0 0
      %1033 = vmatpush2.bf16.msra.mxu0 0
      %1034 = vmatprep.subr.bf16.mxu0 0
      %1035 = vmatpush2.bf16.msra.mxu0 0
      %1036 = vmatprep.subr.bf16.mxu0 0
      %1037 = vmatpush2.bf16.msra.mxu0 0
      %1038 = vmatprep.subr.bf16.mxu0 0
      %1039 = vmatpush2.bf16.msra.mxu0 0
      %1040 = vmatprep.subr.bf16.mxu0 0
      %1041 = vmatpush2.bf16.msra.mxu0 0
      %1042 = vmatprep.subr.bf16.mxu0 0
      %1043 = vmatpush2.bf16.msra.mxu0 0
      %1044 = vmatprep.subr.bf16.mxu0 0
      %1045 = vmatpush2.bf16.msra.mxu0 0
      %1046 = vmatprep.subr.bf16.mxu0 0
      %1047 = vmatpush2.bf16.msra.mxu0 0
      %1048 = vmatprep.mubr.bf16.mxu0 0
      %1049 = vmatmul.mubr.bf16.gmra.mxu0 %v1011
      %v1050 = vpop.f32.mrf.mxu0
      %v1051 = vadd.f32 0.0, %v1050
      %v1052 = vpop.f32.mrf.mxu0
      %v1053 = vpop.f32.mrf.mxu0
      %v1054 = vpop.f32.mrf.mxu0
      %1055 = vdwg.mxu0
      %1057 = vrot.lane.b32.xlu0 %v1051, 8
      %v1058 = vpop.permute.xlu0 %1057
      %vm1060 = vcmask 130112
      %1061 = vst.msk [vmem:[#allocation3] sm:$0xff] %vm1060, %v1058
      %1062 = vrot.lane.b32.xlu0 %v831, 112
      %v1063 = vpop.permute.xlu0 %1062
      %1064 = vrot.lane.b32.xlu0 %v832, 80
      %v1065 = vpop.permute.xlu0 %1064
      %v1067 = vsel %vm836, %v1063, 0
      %v1070 = vsel %vm836, %v1065, 0
      %1072 = vmatprep.subr.bf16.mxu0 0
      %1073 = vmatpush1.bf16.xpose.msra.mxu0 0
      %1074 = vmatprep.subr.bf16.mxu0 0
      %1075 = vmatpush1.bf16.xpose.msra.mxu0 0
      %1076 = vmatprep.subr.bf16.mxu0 0
      %1077 = vmatpush1.bf16.xpose.msra.mxu0 0
      %1078 = vmatprep.subr.bf16.mxu0 0
      %1079 = vmatpush1.bf16.xpose.msra.mxu0 0
      %1080 = vmatprep.subr.bf16.mxu0 0
      %1081 = vmatpush1.bf16.xpose.msra.mxu0 0
      %1082 = vmatprep.subr.bf16.mxu0 0
      %1083 = vmatpush1.bf16.xpose.msra.mxu0 0
      %1084 = vmatprep.subr.bf16.mxu0 0
      %1085 = vmatpush1.bf16.xpose.msra.mxu0 0
      %1086 = vmatprep.subr.bf16.mxu0 0
      %1087 = vmatpush1.bf16.xpose.msra.mxu0 %v1070
      %1088 = vmatprep.subr.bf16.mxu0 0
      %1089 = vmatpush2.bf16.xpose.msra.mxu0 0
      %1090 = vmatprep.subr.bf16.mxu0 0
      %1091 = vmatpush2.bf16.xpose.msra.mxu0 0
      %1092 = vmatprep.subr.bf16.mxu0 0
      %1093 = vmatpush2.bf16.xpose.msra.mxu0 0
      %1094 = vmatprep.subr.bf16.mxu0 0
      %1095 = vmatpush2.bf16.xpose.msra.mxu0 0
      %1096 = vmatprep.subr.bf16.mxu0 0
      %1097 = vmatpush2.bf16.xpose.msra.mxu0 0
      %1098 = vmatprep.subr.bf16.mxu0 0
      %1099 = vmatpush2.bf16.xpose.msra.mxu0 0
      %1100 = vmatprep.subr.bf16.mxu0 0
      %1101 = vmatpush2.bf16.xpose.msra.mxu0 0
      %1102 = vmatprep.subr.bf16.mxu0 0
      %1103 = vmatpush2.bf16.xpose.msra.mxu0 0
      %1104 = vmatprep.mubr.bf16.mxu0 0
      %1105 = vmatmul.mubr.bf16.gmra.mxu0 %v1067
      %v1106 = vpop.f32.mrf.mxu0
      %v1107 = vadd.f32 0.0, %v1106
      %v1108 = vpop.f32.mrf.mxu0
      %v1109 = vpop.f32.mrf.mxu0
      %v1110 = vpop.f32.mrf.mxu0
      %1111 = vdwg.mxu0
      %v1112 = vsel %vm836, %v1107, -inf
      %1113 = vmax.xlane.f32.xlu0 %v1112
      %v1114 = vpop.xlane.xlu0 %1113
      %v1115 = vsub.f32 %v1107, %v1114
      %v1116 = vmul.f32 %v1115, 1.442695
      %v1117 = vpow.pop %v1116
      %v1118 = vsel %vm836, %v1117, 0.0
      %1119 = vadd.xlane.f32.xlu0 %v1118
      %v1120 = vpop.xlane.xlu0 %1119
      %v1121 = vrcp.pop %v1120
      %v1122 = vmul.f32 %v1117, %v1121
      %v1123 = vpack.c.bf16 %v1122, %v1122
      %1124 = vrot.lane.b32.xlu0 %v832, 48
      %v1125 = vpop.permute.xlu0 %1124
      %v1127 = vsel %vm836, %v1123, 0
      %v1130 = vsel %vm900, %v1125, 0
      %1132 = vmatprep.subr.bf16.mxu0 0
      %1133 = vmatpush1.bf16.msra.mxu0 0
      %1134 = vmatprep.subr.bf16.mxu0 0
      %1135 = vmatpush1.bf16.msra.mxu0 0
      %1136 = vmatprep.subr.bf16.mxu0 0
      %1137 = vmatpush1.bf16.msra.mxu0 0
      %1138 = vmatprep.subr.bf16.mxu0 0
      %1139 = vmatpush1.bf16.msra.mxu0 0
      %1140 = vmatprep.subr.bf16.mxu0 0
      %1141 = vmatpush1.bf16.msra.mxu0 0
      %1142 = vmatprep.subr.bf16.mxu0 0
      %1143 = vmatpush1.bf16.msra.mxu0 0
      %1144 = vmatprep.subr.bf16.mxu0 0
      %1145 = vmatpush1.bf16.msra.mxu0 0
      %1146 = vmatprep.subr.bf16.mxu0 0
      %1147 = vmatpush1.bf16.msra.mxu0 %v1130
      %1148 = vmatprep.subr.bf16.mxu0 0
      %1149 = vmatpush2.bf16.msra.mxu0 0
      %1150 = vmatprep.subr.bf16.mxu0 0
      %1151 = vmatpush2.bf16.msra.mxu0 0
      %1152 = vmatprep.subr.bf16.mxu0 0
      %1153 = vmatpush2.bf16.msra.mxu0 0
      %1154 = vmatprep.subr.bf16.mxu0 0
      %1155 = vmatpush2.bf16.msra.mxu0 0
      %1156 = vmatprep.subr.bf16.mxu0 0
      %1157 = vmatpush2.bf16.msra.mxu0 0
      %1158 = vmatprep.subr.bf16.mxu0 0
      %1159 = vmatpush2.bf16.msra.mxu0 0
      %1160 = vmatprep.subr.bf16.mxu0 0
      %1161 = vmatpush2.bf16.msra.mxu0 0
      %1162 = vmatprep.subr.bf16.mxu0 0
      %1163 = vmatpush2.bf16.msra.mxu0 0
      %1164 = vmatprep.mubr.bf16.mxu0 0
      %1165 = vmatmul.mubr.bf16.gmra.mxu0 %v1127
      %v1166 = vpop.f32.mrf.mxu0
      %v1167 = vadd.f32 0.0, %v1166
      %v1168 = vpop.f32.mrf.mxu0
      %v1169 = vpop.f32.mrf.mxu0
      %v1170 = vpop.f32.mrf.mxu0
      %1171 = vdwg.mxu0
      %1173 = vrot.lane.b32.xlu0 %v1167, 16
      %v1174 = vpop.permute.xlu0 %1173
      %vm1176 = vcmask 195712
      %1177 = vst.msk [vmem:[#allocation3] sm:$0xff] %vm1176, %v1174
      %1178 = vrot.lane.b32.xlu0 %v831, 104
      %v1179 = vpop.permute.xlu0 %1178
      %1180 = vrot.lane.b32.xlu0 %v832, 72
      %v1181 = vpop.permute.xlu0 %1180
      %v1183 = vsel %vm836, %v1179, 0
      %v1186 = vsel %vm836, %v1181, 0
      %1188 = vmatprep.subr.bf16.mxu0 0
      %1189 = vmatpush1.bf16.xpose.msra.mxu0 0
      %1190 = vmatprep.subr.bf16.mxu0 0
      %1191 = vmatpush1.bf16.xpose.msra.mxu0 0
      %1192 = vmatprep.subr.bf16.mxu0 0
      %1193 = vmatpush1.bf16.xpose.msra.mxu0 0
      %1194 = vmatprep.subr.bf16.mxu0 0
      %1195 = vmatpush1.bf16.xpose.msra.mxu0 0
      %1196 = vmatprep.subr.bf16.mxu0 0
      %1197 = vmatpush1.bf16.xpose.msra.mxu0 0
      %1198 = vmatprep.subr.bf16.mxu0 0
      %1199 = vmatpush1.bf16.xpose.msra.mxu0 0
      %1200 = vmatprep.subr.bf16.mxu0 0
      %1201 = vmatpush1.bf16.xpose.msra.mxu0 0
      %1202 = vmatprep.subr.bf16.mxu0 0
      %1203 = vmatpush1.bf16.xpose.msra.mxu0 %v1186
      %1204 = vmatprep.subr.bf16.mxu0 0
      %1205 = vmatpush2.bf16.xpose.msra.mxu0 0
      %1206 = vmatprep.subr.bf16.mxu0 0
      %1207 = vmatpush2.bf16.xpose.msra.mxu0 0
      %1208 = vmatprep.subr.bf16.mxu0 0
      %1209 = vmatpush2.bf16.xpose.msra.mxu0 0
      %1210 = vmatprep.subr.bf16.mxu0 0
      %1211 = vmatpush2.bf16.xpose.msra.mxu0 0
      %1212 = vmatprep.subr.bf16.mxu0 0
      %1213 = vmatpush2.bf16.xpose.msra.mxu0 0
      %1214 = vmatprep.subr.bf16.mxu0 0
      %1215 = vmatpush2.bf16.xpose.msra.mxu0 0
      %1216 = vmatprep.subr.bf16.mxu0 0
      %1217 = vmatpush2.bf16.xpose.msra.mxu0 0
      %1218 = vmatprep.subr.bf16.mxu0 0
      %1219 = vmatpush2.bf16.xpose.msra.mxu0 0
      %1220 = vmatprep.mubr.bf16.mxu0 0
      %1221 = vmatmul.mubr.bf16.gmra.mxu0 %v1183
      %v1222 = vpop.f32.mrf.mxu0
      %v1223 = vadd.f32 0.0, %v1222
      %v1224 = vpop.f32.mrf.mxu0
      %v1225 = vpop.f32.mrf.mxu0
      %v1226 = vpop.f32.mrf.mxu0
      %1227 = vdwg.mxu0
      %v1228 = vsel %vm836, %v1223, -inf
      %1229 = vmax.xlane.f32.xlu0 %v1228
      %v1230 = vpop.xlane.xlu0 %1229
      %v1231 = vsub.f32 %v1223, %v1230
      %v1232 = vmul.f32 %v1231, 1.442695
      %v1233 = vpow.pop %v1232
      %v1234 = vsel %vm836, %v1233, 0.0
      %1235 = vadd.xlane.f32.xlu0 %v1234
      %v1236 = vpop.xlane.xlu0 %1235
      %v1237 = vrcp.pop %v1236
      %v1238 = vmul.f32 %v1233, %v1237
      %v1239 = vpack.c.bf16 %v1238, %v1238
      %1240 = vrot.lane.b32.xlu0 %v832, 40
      %v1241 = vpop.permute.xlu0 %1240
      %v1243 = vsel %vm836, %v1239, 0
      %v1246 = vsel %vm900, %v1241, 0
      %1248 = vmatprep.subr.bf16.mxu0 0
      %1249 = vmatpush1.bf16.msra.mxu0 0
      %1250 = vmatprep.subr.bf16.mxu0 0
      %1251 = vmatpush1.bf16.msra.mxu0 0
      %1252 = vmatprep.subr.bf16.mxu0 0
      %1253 = vmatpush1.bf16.msra.mxu0 0
      %1254 = vmatprep.subr.bf16.mxu0 0
      %1255 = vmatpush1.bf16.msra.mxu0 0
      %1256 = vmatprep.subr.bf16.mxu0 0
      %1257 = vmatpush1.bf16.msra.mxu0 0
      %1258 = vmatprep.subr.bf16.mxu0 0
      %1259 = vmatpush1.bf16.msra.mxu0 0
      %1260 = vmatprep.subr.bf16.mxu0 0
      %1261 = vmatpush1.bf16.msra.mxu0 0
      %1262 = vmatprep.subr.bf16.mxu0 0
      %1263 = vmatpush1.bf16.msra.mxu0 %v1246
      %1264 = vmatprep.subr.bf16.mxu0 0
      %1265 = vmatpush2.bf16.msra.mxu0 0
      %1266 = vmatprep.subr.bf16.mxu0 0
      %1267 = vmatpush2.bf16.msra.mxu0 0
      %1268 = vmatprep.subr.bf16.mxu0 0
      %1269 = vmatpush2.bf16.msra.mxu0 0
      %1270 = vmatprep.subr.bf16.mxu0 0
      %1271 = vmatpush2.bf16.msra.mxu0 0
      %1272 = vmatprep.subr.bf16.mxu0 0
      %1273 = vmatpush2.bf16.msra.mxu0 0
      %1274 = vmatprep.subr.bf16.mxu0 0
      %1275 = vmatpush2.bf16.msra.mxu0 0
      %1276 = vmatprep.subr.bf16.mxu0 0
      %1277 = vmatpush2.bf16.msra.mxu0 0
      %1278 = vmatprep.subr.bf16.mxu0 0
      %1279 = vmatpush2.bf16.msra.mxu0 0
      %1280 = vmatprep.mubr.bf16.mxu0 0
      %1281 = vmatmul.mubr.bf16.gmra.mxu0 %v1243
      %v1282 = vpop.f32.mrf.mxu0
      %v1283 = vadd.f32 0.0, %v1282
      %v1284 = vpop.f32.mrf.mxu0
      %v1285 = vpop.f32.mrf.mxu0
      %v1286 = vpop.f32.mrf.mxu0
      %1287 = vdwg.mxu0
      %1289 = vrot.lane.b32.xlu0 %v1283, 24
      %v1290 = vpop.permute.xlu0 %1289
      %vm1292 = vcmask 261312
      %1293 = vst.msk [vmem:[#allocation3] sm:$0xff] %vm1292, %v1290
      %v1294 = vld [vmem:[#allocation3] sm:$0xff]
      %v1295 = vpack.c.bf16 %v1294, %v1294
      %v1296 = vld [vmem:[%s685] sm:$0xf]
      %v1297 = vld [vmem:[%s685 + $0x4] sm:$0xf]
      %v1298 = vld [vmem:[%s685 + $0x8] sm:$0xf]
      %v1299 = vld [vmem:[%s685 + $0xc] sm:$0xf]
      %v1300 = vld [vmem:[%s688] sm:$0x1]
      %v1302 = vlaneseq
      %v1303 = vshrl.u32 %v1302, 7
      %v1304 = vsub.s32 0, %v1303
      %v1305 = vrot.slane %v1300, %v1304
      %v1311 = vunpack.c.l.b16 %v1296
      %v1312 = vunpack.c.l.b16 %v1297
      %v1313 = vunpack.c.l.b16 %v1298
      %v1314 = vunpack.c.l.b16 %v1299
      %v1315 = vpack.c.b16 %v1312, %v1311
      %v1316 = vpack.c.b16 %v1314, %v1313
      %v1320 = vsel %vm786, %v1295, 0
      %1322 = vmatprep.subr.bf16.mxu0 0
      %1323 = vmatpush1.bf16.msra.mxu0 0
      %1324 = vmatprep.subr.bf16.mxu0 0
      %1325 = vmatpush1.bf16.msra.mxu0 0
      %1326 = vmatprep.subr.bf16.mxu0 0
      %1327 = vmatpush1.bf16.msra.mxu0 0
      %1328 = vmatprep.subr.bf16.mxu0 0
      %1329 = vmatpush1.bf16.msra.mxu0 0
      %1330 = vmatprep.subr.bf16.mxu0 0
      %1331 = vmatpush1.bf16.msra.mxu0 0
      %1332 = vmatprep.subr.bf16.mxu0 0
      %1333 = vmatpush1.bf16.msra.mxu0 0
      %1334 = vmatprep.subr.bf16.mxu0 0
      %1335 = vmatpush1.bf16.msra.mxu0 %v1316
      %1336 = vmatprep.subr.bf16.mxu0 0
      %1337 = vmatpush1.bf16.msra.mxu0 %v1315
      %1338 = vmatprep.subr.bf16.mxu0 0
      %1339 = vmatpush2.bf16.msra.mxu0 0
      %1340 = vmatprep.subr.bf16.mxu0 0
      %1341 = vmatpush2.bf16.msra.mxu0 0
      %1342 = vmatprep.subr.bf16.mxu0 0
      %1343 = vmatpush2.bf16.msra.mxu0 0
      %1344 = vmatprep.subr.bf16.mxu0 0
      %1345 = vmatpush2.bf16.msra.mxu0 0
      %1346 = vmatprep.subr.bf16.mxu0 0
      %1347 = vmatpush2.bf16.msra.mxu0 0
      %1348 = vmatprep.subr.bf16.mxu0 0
      %1349 = vmatpush2.bf16.msra.mxu0 0
      %1350 = vmatprep.subr.bf16.mxu0 0
      %1351 = vmatpush2.bf16.msra.mxu0 0
      %1352 = vmatprep.subr.bf16.mxu0 0
      %1353 = vmatpush2.bf16.msra.mxu0 0
      %1354 = vmatprep.mubr.bf16.mxu0 0
      %1355 = vmatmul.mubr.bf16.gmra.mxu0 %v1320
      %v1356 = vpop.f32.mrf.mxu0
      %v1357 = vadd.f32 %v1305, %v1356
      %v1358 = vpop.f32.mrf.mxu0
      %v1359 = vpop.f32.mrf.mxu0
      %v1360 = vpop.f32.mrf.mxu0
      %1361 = vdwg.mxu0
      %v1362 = vadd.f32 %v761, %v1357
      %v1363 = vld [vmem:[%s691] sm:$0x1]
      %v1364 = vld [vmem:[%s694] sm:$0x1]
      %v1365 = vsel %vm786, %v1362, 0.0
      %1366 = vadd.xlane.f32.xlu0 %v1365
      %v1367 = vpop.xlane.xlu0 %1366
      %v1368 = vrcp.pop 32.0
      %v1369 = vmul.f32 %v1367, %v1368
      %v1370 = vsub.f32 %v1362, %v1369
      %v1371 = vmul.f32 %v1370, %v1370
      %v1372 = vsel %vm786, %v1371, 0.0
      %1373 = vadd.xlane.f32.xlu0 %v1372
      %v1374 = vpop.xlane.xlu0 %1373
      %v1375 = vmul.f32 %v1374, %v1368
      %v1376 = vadd.f32 %v1375, 1e-05
      %v1377 = vrsqrt.pop %v1376
      %v1378 = vmul.f32 %v1370, %v1377
      %v1380 = vlaneseq
      %v1381 = vshrl.u32 %v1380, 7
      %v1382 = vsub.s32 0, %v1381
      %v1383 = vrot.slane %v1363, %v1382
      %v1385 = vmul.f32 %v1378, %v1383
      %v1387 = vlaneseq
      %v1388 = vshrl.u32 %v1387, 7
      %v1389 = vsub.s32 0, %v1388
      %v1390 = vrot.slane %v1364, %v1389
      %v1392 = vadd.f32 %v1385, %v1390
      %v1393 = vpack.c.bf16 %v1392, %v1392
      %v1394 = vld [vmem:[%s699] sm:$0xf]
      %v1395 = vld [vmem:[%s699 + $0x4] sm:$0xf]
      %v1396 = vld [vmem:[%s699 + $0x8] sm:$0xf]
      %v1397 = vld [vmem:[%s699 + $0xc] sm:$0xf]
      %v1398 = vld [vmem:[%s702] sm:$0x1]
      %v1400 = vlaneseq
      %v1401 = vshrl.u32 %v1400, 7
      %v1402 = vsub.s32 0, %v1401
      %v1403 = vrot.slane %v1398, %v1402
      %v1409 = vunpack.c.l.b16 %v1394
      %v1410 = vunpack.c.l.b16 %v1395
      %v1411 = vunpack.c.l.b16 %v1396
      %v1412 = vunpack.c.l.b16 %v1397
      %v1413 = vpack.c.b16 %v1410, %v1409
      %v1414 = vpack.c.b16 %v1412, %v1411
      %v1418 = vsel %vm786, %v1393, 0
      %1420 = vmatprep.subr.bf16.mxu0 0
      %1421 = vmatpush1.bf16.msra.mxu0 0
      %1422 = vmatprep.subr.bf16.mxu0 0
      %1423 = vmatpush1.bf16.msra.mxu0 0
      %1424 = vmatprep.subr.bf16.mxu0 0
      %1425 = vmatpush1.bf16.msra.mxu0 0
      %1426 = vmatprep.subr.bf16.mxu0 0
      %1427 = vmatpush1.bf16.msra.mxu0 0
      %1428 = vmatprep.subr.bf16.mxu0 0
      %1429 = vmatpush1.bf16.msra.mxu0 0
      %1430 = vmatprep.subr.bf16.mxu0 0
      %1431 = vmatpush1.bf16.msra.mxu0 0
      %1432 = vmatprep.subr.bf16.mxu0 0
      %1433 = vmatpush1.bf16.msra.mxu0 %v1414
      %1434 = vmatprep.subr.bf16.mxu0 0
      %1435 = vmatpush1.bf16.msra.mxu0 %v1413
      %1436 = vmatprep.subr.bf16.mxu0 0
      %1437 = vmatpush2.bf16.msra.mxu0 0
      %1438 = vmatprep.subr.bf16.mxu0 0
      %1439 = vmatpush2.bf16.msra.mxu0 0
      %1440 = vmatprep.subr.bf16.mxu0 0
      %1441 = vmatpush2.bf16.msra.mxu0 0
      %1442 = vmatprep.subr.bf16.mxu0 0
      %1443 = vmatpush2.bf16.msra.mxu0 0
      %1444 = vmatprep.subr.bf16.mxu0 0
      %1445 = vmatpush2.bf16.msra.mxu0 0
      %1446 = vmatprep.subr.bf16.mxu0 0
      %1447 = vmatpush2.bf16.msra.mxu0 0
      %1448 = vmatprep.subr.bf16.mxu0 0
      %1449 = vmatpush2.bf16.msra.mxu0 0
      %1450 = vmatprep.subr.bf16.mxu0 0
      %1451 = vmatpush2.bf16.msra.mxu0 0
      %1452 = vmatprep.mubr.bf16.mxu0 0
      %1453 = vmatmul.mubr.bf16.gmra.mxu0 %v1418
      %v1454 = vpop.f32.mrf.mxu0
      %v1455 = vadd.f32 %v1403, %v1454
      %v1456 = vpop.f32.mrf.mxu0
      %v1457 = vpop.f32.mrf.mxu0
      %v1458 = vpop.f32.mrf.mxu0
      %1459 = vdwg.mxu0
      %v1460 = vmul.f32 %v1455, 0.5
      %v1461 = vmul.f32 %v1455, 0.044715
      %v1462 = vmul.f32 %v1461, %v1455
      %v1463 = vmul.f32 %v1462, %v1455
      %v1464 = vadd.f32 %v1455, %v1463
      %v1465 = vmul.f32 %v1464, 0.7978846
      %v1466 = vtanh.pop %v1465
      %v1467 = vadd.f32 %v1466, 1.0
      %v1468 = vmul.f32 %v1460, %v1467
      %v1469 = vpack.c.bf16 %v1468, %v1468
      %v1470 = vld [vmem:[%s707] sm:$0xf]
      %v1471 = vld [vmem:[%s707 + $0x4] sm:$0xf]
      %v1472 = vld [vmem:[%s707 + $0x8] sm:$0xf]
      %v1473 = vld [vmem:[%s707 + $0xc] sm:$0xf]
      %v1474 = vld [vmem:[%s707 + $0x10] sm:$0xf]
      %v1475 = vld [vmem:[%s707 + $0x14] sm:$0xf]
      %v1476 = vld [vmem:[%s707 + $0x18] sm:$0xf]
      %v1477 = vld [vmem:[%s707 + $0x1c] sm:$0xf]
      %v1478 = vld [vmem:[%s710] sm:$0x1]
      %v1480 = vlaneseq
      %v1481 = vshrl.u32 %v1480, 7
      %v1482 = vsub.s32 0, %v1481
      %v1483 = vrot.slane %v1478, %v1482
      %v1493 = vunpack.c.l.b16 %v1470
      %v1494 = vunpack.c.l.b16 %v1471
      %v1495 = vunpack.c.l.b16 %v1472
      %v1496 = vunpack.c.l.b16 %v1473
      %v1497 = vunpack.c.l.b16 %v1474
      %v1498 = vunpack.c.l.b16 %v1475
      %v1499 = vunpack.c.l.b16 %v1476
      %v1500 = vunpack.c.l.b16 %v1477
      %v1501 = vpack.c.b16 %v1494, %v1493
      %v1502 = vpack.c.b16 %v1496, %v1495
      %v1503 = vpack.c.b16 %v1498, %v1497
      %v1504 = vpack.c.b16 %v1500, %v1499
      %vm1509 = vcmask 523264
      %v1511 = vsel %vm1509, %v1469, 0
      %1513 = vmatprep.subr.bf16.mxu0 0
      %1514 = vmatpush1.bf16.msra.mxu0 0
      %1515 = vmatprep.subr.bf16.mxu0 0
      %1516 = vmatpush1.bf16.msra.mxu0 0
      %1517 = vmatprep.subr.bf16.mxu0 0
      %1518 = vmatpush1.bf16.msra.mxu0 0
      %1519 = vmatprep.subr.bf16.mxu0 0
      %1520 = vmatpush1.bf16.msra.mxu0 0
      %1521 = vmatprep.subr.bf16.mxu0 0
      %1522 = vmatpush1.bf16.msra.mxu0 %v1504
      %1523 = vmatprep.subr.bf16.mxu0 0
      %1524 = vmatpush1.bf16.msra.mxu0 %v1503
      %1525 = vmatprep.subr.bf16.mxu0 0
      %1526 = vmatpush1.bf16.msra.mxu0 %v1502
      %1527 = vmatprep.subr.bf16.mxu0 0
      %1528 = vmatpush1.bf16.msra.mxu0 %v1501
      %1529 = vmatprep.subr.bf16.mxu0 0
      %1530 = vmatpush2.bf16.msra.mxu0 0
      %1531 = vmatprep.subr.bf16.mxu0 0
      %1532 = vmatpush2.bf16.msra.mxu0 0
      %1533 = vmatprep.subr.bf16.mxu0 0
      %1534 = vmatpush2.bf16.msra.mxu0 0
      %1535 = vmatprep.subr.bf16.mxu0 0
      %1536 = vmatpush2.bf16.msra.mxu0 0
      %1537 = vmatprep.subr.bf16.mxu0 0
      %1538 = vmatpush2.bf16.msra.mxu0 0
      %1539 = vmatprep.subr.bf16.mxu0 0
      %1540 = vmatpush2.bf16.msra.mxu0 0
      %1541 = vmatprep.subr.bf16.mxu0 0
      %1542 = vmatpush2.bf16.msra.mxu0 0
      %1543 = vmatprep.subr.bf16.mxu0 0
      %1544 = vmatpush2.bf16.msra.mxu0 0
      %1545 = vmatprep.mubr.bf16.mxu0 0
      %1546 = vmatmul.mubr.bf16.gmra.mxu0 %v1511
      %v1547 = vpop.f32.mrf.mxu0
      %v1548 = vadd.f32 %v1483, %v1547
      %v1549 = vpop.f32.mrf.mxu0
      %v1550 = vpop.f32.mrf.mxu0
      %v1551 = vpop.f32.mrf.mxu0
      %1552 = vdwg.mxu0
      %v1553 = vadd.f32 %v1392, %v1548
      %v1554 = vld [vmem:[%s713] sm:$0x1]
      %v1555 = vld [vmem:[%s716] sm:$0x1]
      %v1556 = vsel %vm786, %v1553, 0.0
      %1557 = vadd.xlane.f32.xlu0 %v1556
      %v1558 = vpop.xlane.xlu0 %1557
      %v1559 = vmul.f32 %v1558, %v1368
      %v1560 = vsub.f32 %v1553, %v1559
      %v1561 = vmul.f32 %v1560, %v1560
      %v1562 = vsel %vm786, %v1561, 0.0
      %1563 = vadd.xlane.f32.xlu0 %v1562
      %v1564 = vpop.xlane.xlu0 %1563
      %v1565 = vmul.f32 %v1564, %v1368
      %v1566 = vadd.f32 %v1565, 1e-05
      %v1567 = vrsqrt.pop %v1566
      %v1568 = vmul.f32 %v1560, %v1567
      %v1570 = vlaneseq
      %v1571 = vshrl.u32 %v1570, 7
      %v1572 = vsub.s32 0, %v1571
      %v1573 = vrot.slane %v1554, %v1572
      %v1575 = vmul.f32 %v1568, %v1573
      %v1577 = vlaneseq
      %v1578 = vshrl.u32 %v1577, 7
      %v1579 = vsub.s32 0, %v1578
      %v1580 = vrot.slane %v1555, %v1579
      %v1582 = vadd.f32 %v1575, %v1580
      %1583 = vst.msk [vmem:[#allocation2] sm:$0xff] %vm786, %v1582
      %p1584 = scmp.eq.s32.totalorder %s32, 1
      // Predicated region
      $region89: #{_lambda_.2} parent=83 // pred_check
        %p1585 = pneg %p1584
      $region90: #{_lambda_.2} parent=83 // pred_check_branch
        %1587 = sbr.rel (%p1585) target = $region92
      $region91: #{_lambda_.2} parent=83 // pred_region
        %1588 = vst.msk [vmem:[%s720] sm:$0xff] %vm786, %v1582
      $region92: #{_lambda_.2} parent=83 // pred_fallthru
        _
      %p1589 = scmp.lt.s32.totalorder %s31, 1
      %s1590 = scalar_select %p1589, %s31, 1
      %s1591 = smul.addr %s1590, 8
      %s1592 = scalar_lea.vmem %s16, %s1591
      // Predicated region
      $region93: #{_lambda_.2} parent=83 // pred_check
        %p1593 = pneg %p458
      $region94: #{_lambda_.2} parent=83 // pred_check_branch
        %1595 = sbr.rel (%p1593) target = $region96
      $region95: #{_lambda_.2} parent=83 // pred_region
        _
      $region96: #{_lambda_.2} parent=83 // pred_fallthru
        _
    $region84: #{_lambda_.2} parent=5 // pred_fallthru
      _
    %p1596 = scmp.le.s32.totalorder 2, %s22
    // Predicated region
    $region97: #{_lambda_.2} parent=5 // pred_check
      %p1597 = pneg %p1596
    $region98: #{_lambda_.2} parent=5 // pred_check_branch
      %1599 = sbr.rel (%p1597) target = $region100
    $region99: #{_lambda_.2} parent=5 // pred_region
      %s1600 = ssub.s32 %s22, 2
      // Predicated region
      $region101: #{_lambda_.2} parent=99 // pred_check
        %p1601 = pneg %p464
      $region102: #{_lambda_.2} parent=99 // pred_check_branch
        %1603 = sbr.rel (%p1601) target = $region104
      $region103: #{_lambda_.2} parent=99 // pred_region
        %p1604 = scmp.lt.s32.totalorder %s33, 1
        %s1605 = scalar_select %p1604, %s33, 1
        %s1606 = smul.addr %s1605, 8
        %s1607 = scalar_lea.vmem %s16, %s1606
      $region104: #{_lambda_.2} parent=99 // pred_fallthru
        _
    $region100: #{_lambda_.2} parent=5 // pred_fallthru
      _
  $region6: #{_lambda_.2} parent=0 // loop_footer
    %s26 = sadd.s32 1, %s22
  $region7: #{_lambda_.2} parent=0 // loop_footer_branch
    %21 = sbr.rel target = $region3
  $region8: #{_lambda_.2} parent=0 // loop_exit
    _

</llo_original>
